<compile_context>
chip_gen: v5e
topology: v5e:2x2
jax: 0.10.0
libtpu: 0.0.40
codegen_flags: <defaults>
</compile_context>

<pallas_src>
import jax
import jax.numpy as jnp
from jax.experimental import pallas as pl
from jax.experimental.pallas import tpu as pltpu

LANES = 128
_VMEM_LIMIT = 32 * 1024 * 1024


def _round_up(x, m):
    return ((x + m - 1) // m) * m


def _pick_batch_tile(B):
    # Block second-minor dims must be a multiple of 8 or equal the full dim.
    if B % 8 == 0 and B > 8:
        return 8
    return B


# --------------------------------------------------------------------------
# Kernel 1: LSTM recurrence for one layer.  One grid step per batch tile
# ("parallel"); the time loop runs inside the kernel.  The time-independent
# input projection (x @ W_ih + b) arrives precomputed as `gx`.
# --------------------------------------------------------------------------
def _lstm_recurrence_kernel(gx_ref, whhT_ref, h0_ref, c0_ref,
                            y_ref, hT_ref, cT_ref):
    T = gx_ref.shape[0]
    HP = h0_ref.shape[-1]

    # Load the recurrent weight once; (h, c) live in the loop carry (vregs),
    # not VMEM scratch, so the serial path is just matmul + gates.
    whhT = whhT_ref[...]

    def step(t, carry):
        h, c = carry
        # Only the recurrent matmul sits on the serial path.
        g = gx_ref[t] + jnp.dot(h, whhT, preferred_element_type=jnp.float32)
        # 128-lane-aligned gate blocks (PyTorch order i, f, g, o).
        i_g = jax.nn.sigmoid(g[:, 0 * HP:1 * HP])
        f_g = jax.nn.sigmoid(g[:, 1 * HP:2 * HP])
        g_g = jnp.tanh(g[:, 2 * HP:3 * HP])
        o_g = jax.nn.sigmoid(g[:, 3 * HP:4 * HP])
        c_new = f_g * c + i_g * g_g
        h_new = o_g * jnp.tanh(c_new)
        y_ref[t] = h_new.astype(y_ref.dtype)   # lane-dense (Bb, HP) row write
        return (h_new, c_new)

    h_fin, c_fin = jax.lax.fori_loop(
        0, T, step, (h0_ref[...], c0_ref[...]), unroll=True)
    # Written unconditionally every grid step (time is not a grid axis).
    hT_ref[...] = h_fin
    cT_ref[...] = c_fin


def lstm_recurrence_pallas(gx, whh_T, h0, c0):
    T, B, G4 = gx.shape
    HP = whh_T.shape[0]
    assert G4 == 4 * HP
    Bb = _pick_batch_tile(B)
    NB = B // Bb

    return pl.pallas_call(
        _lstm_recurrence_kernel,
        out_shape=(jax.ShapeDtypeStruct((T, B, HP), jnp.float32),
                   jax.ShapeDtypeStruct((B, HP), jnp.float32),
                   jax.ShapeDtypeStruct((B, HP), jnp.float32)),
        grid_spec=pltpu.PrefetchScalarGridSpec(
            num_scalar_prefetch=0,
            grid=(NB,),
            in_specs=[
                pl.BlockSpec((T, Bb, G4), lambda nb: (0, nb, 0)),
                pl.BlockSpec((HP, G4), lambda nb: (0, 0)),
                pl.BlockSpec((Bb, HP), lambda nb: (nb, 0)),
                pl.BlockSpec((Bb, HP), lambda nb: (nb, 0)),
            ],
            out_specs=[
                pl.BlockSpec((T, Bb, HP), lambda nb: (0, nb, 0)),
                pl.BlockSpec((Bb, HP), lambda nb: (nb, 0)),
                pl.BlockSpec((Bb, HP), lambda nb: (nb, 0)),
            ],
        ),
        compiler_params=pltpu.CompilerParams(
            dimension_semantics=("parallel",),
            vmem_limit_bytes=_VMEM_LIMIT),
    )(gx, whh_T, h0, c0)


def _pack_lstm_weights(wih, whh, bih, bhh, H, HP, DinP):
    """Pre-transpose + zero-pad into gate-aligned 128-lane blocks."""
    Din = wih.shape[1]
    wih_T = jnp.zeros((DinP, 4 * HP), jnp.float32)
    whh_T = jnp.zeros((HP, 4 * HP), jnp.float32)
    bias = jnp.zeros((1, 4 * HP), jnp.float32)
    bsum = (bih + bhh).astype(jnp.float32)
    for g in range(4):
        wih_T = wih_T.at[:Din, g * HP:g * HP + H].set(
            wih[g * H:(g + 1) * H, :].T.astype(jnp.float32))
        whh_T = whh_T.at[:H, g * HP:g * HP + H].set(
            whh[g * H:(g + 1) * H, :].T.astype(jnp.float32))
        bias = bias.at[0, g * HP:g * HP + H].set(bsum[g * H:(g + 1) * H])
    return wih_T, whh_T, bias


def lstm_layer(inp, wih, whh, bih, bhh, H, HP):
    """One LSTM layer: hoisted input projection (XLA) + Pallas recurrence."""
    T, B, DinP = inp.shape
    wih_T, whh_T, bias = _pack_lstm_weights(wih, whh, bih, bhh, H, HP, DinP)
    # Hoisted, time-independent input projection: a single (T*B, Din) matmul
    # (M = T*B instead of B per time step), done once outside the recurrence.
    gx = (jnp.dot(inp.reshape(T * B, DinP), wih_T,
                  preferred_element_type=jnp.float32) + bias
          ).reshape(T, B, 4 * HP)
    h0 = jnp.zeros((B, HP), jnp.float32)
    c0 = jnp.zeros((B, HP), jnp.float32)
    return lstm_recurrence_pallas(gx, whh_T, h0, c0)


# --------------------------------------------------------------------------
# Kernel 2: attention + concat-linear1 + tanh + linear2 + log_softmax,
# one grid step per batch tile.  concat(context, output) @ W1^T is split into
# two matmuls (context @ W1[:, :H]^T + output @ W1[:, H:]^T) to avoid an
# in-kernel lane concat; scores contract over H directly (no he transpose).
# --------------------------------------------------------------------------
def _attn_output_kernel(hd_ref, he_ref, w1cT_ref, w1hT_ref, b1_ref,
                        w2T_ref, b2_ref, out_ref, hd_scr, ctx_scr):
    T, Bb, HP = hd_ref.shape

    hd = hd_ref[...]                        # (T, Bb, HP) decoder states
    he = he_ref[...]                        # (S, Bb, HP) encoded source

    # Per-batch bmm attention (static loop over the small batch tile).
    for b in range(Bb):
        hd_b = hd[:, b, :]                  # (T, HP)
        he_b = he[:, b, :]                  # (S, HP)
        # Contract over H directly -- no in-kernel transpose of he.
        scores = jax.lax.dot_general(
            hd_b, he_b, (((1,), (1,)), ((), ())),
            preferred_element_type=jnp.float32)           # (T, S)
        m = jnp.max(scores, axis=-1, keepdims=True)
        e = jnp.exp(scores - m)
        denom = jnp.sum(e, axis=-1, keepdims=True)
        attn = e * pl.reciprocal(denom, approx=True)      # softmax(dim=2), EUP
        ctx_b = jnp.dot(attn, he_b, preferred_element_type=jnp.float32)
        # Stage rows b-major so the W1/W2 matmuls run at M = Bb*T.
        hd_scr[b * T:(b + 1) * T, :] = hd_b
        ctx_scr[b * T:(b + 1) * T, :] = ctx_b

    z = jnp.tanh(
        jnp.dot(ctx_scr[...], w1cT_ref[...], preferred_element_type=jnp.float32)
        + jnp.dot(hd_scr[...], w1hT_ref[...], preferred_element_type=jnp.float32)
        + b1_ref[...])                                    # (Bb*T, EP)

    logits = jnp.dot(z, w2T_ref[...],
                     preferred_element_type=jnp.float32) + b2_ref[...]
    lm = jnp.max(logits, axis=-1, keepdims=True)
    sh = logits - lm
    lse = jnp.log(jnp.sum(jnp.exp(sh), axis=-1, keepdims=True))
    logp = sh - lse                                       # (Bb*T, VP)

    # Scatter rows back into the (T, Bb, VP) time-major output block.
    for b in range(Bb):
        out_ref[:, b:b + 1, :] = (
            logp[b * T:(b + 1) * T, :][:, None, :].astype(out_ref.dtype))


def attn_output_pallas(hd, he, w1c_T, w1h_T, b1p, w2_T, b2p):
    T, B, HP = hd.shape
    S = he.shape[0]
    EP = w1c_T.shape[1]
    VP = w2_T.shape[1]
    Bb = _pick_batch_tile(B)
    NB = B // Bb

    return pl.pallas_call(
        _attn_output_kernel,
        out_shape=jax.ShapeDtypeStruct((T, B, VP), jnp.float32),
        grid_spec=pltpu.PrefetchScalarGridSpec(
            num_scalar_prefetch=0,
            grid=(NB,),
            in_specs=[
                pl.BlockSpec((T, Bb, HP), lambda nb: (0, nb, 0)),
                pl.BlockSpec((S, Bb, HP), lambda nb: (0, nb, 0)),
                pl.BlockSpec((HP, EP), lambda nb: (0, 0)),
                pl.BlockSpec((HP, EP), lambda nb: (0, 0)),
                pl.BlockSpec((1, EP), lambda nb: (0, 0)),
                pl.BlockSpec((EP, VP), lambda nb: (0, 0)),
                pl.BlockSpec((1, VP), lambda nb: (0, 0)),
            ],
            out_specs=pl.BlockSpec((T, Bb, VP), lambda nb: (0, nb, 0)),
            scratch_shapes=[pltpu.VMEM((Bb * T, HP), jnp.float32),
                            pltpu.VMEM((Bb * T, HP), jnp.float32)],
        ),
        compiler_params=pltpu.CompilerParams(
            dimension_semantics=("parallel",),
            vmem_limit_bytes=_VMEM_LIMIT),
    )(hd, he, w1c_T, w1h_T, b1p, w2_T, b2p)


# --------------------------------------------------------------------------
# Full forward: embedding lookup + per-layer LSTM kernel + attention kernel.
# --------------------------------------------------------------------------
def basic_attention_decoder_forward(trg, encoded_src, emb, lstm_params,
                                    w1, b1, w2, b2):
    T, B = trg.shape
    V, E = emb.shape
    H = lstm_params[0][1].shape[1]
    S = encoded_src.shape[0]
    HP = _round_up(H, LANES)
    EP = _round_up(E, LANES)
    VP = _round_up(V, LANES)

    # Embedding lookup (gather) + lane padding: XLA glue.  Dropout: identity.
    emb_p = jnp.zeros((V, EP), jnp.float32).at[:, :E].set(emb.astype(jnp.float32))
    x = emb_p[trg]                                   # (T, B, EP)

    inp = x
    h_finals, c_finals = [], []
    for (wih, whh, bih, bhh) in lstm_params:
        y, hT, cT = lstm_layer(inp, wih, whh, bih, bhh, H, HP)
        h_finals.append(hT[:, :H])
        c_finals.append(cT[:, :H])
        inp = y                                      # inter-layer dropout: identity
    # inp: (T, B, HP) lane-dense decoder states -- already in the layout the
    # attention kernel consumes (no wrapper transpose).

    # encoded_src consumed in its native (S, B, H) layout; zero-pad lanes to HP.
    he = jnp.zeros((S, B, HP), jnp.float32).at[:, :, :H].set(
        encoded_src.astype(jnp.float32))

    # One-time weight packing (pre-transposed, zero-padded).
    w1c_T = jnp.zeros((HP, EP), jnp.float32).at[:H, :E].set(
        w1[:, :H].T.astype(jnp.float32))             # context half of linear1
    w1h_T = jnp.zeros((HP, EP), jnp.float32).at[:H, :E].set(
        w1[:, H:].T.astype(jnp.float32))             # lstm-output half of linear1
    b1p = jnp.zeros((1, EP), jnp.float32).at[0, :E].set(b1.astype(jnp.float32))
    w2_T = jnp.zeros((EP, VP), jnp.float32).at[:E, :V].set(
        w2.T.astype(jnp.float32))
    # Padded vocab lanes get a very negative bias so they vanish in log_softmax.
    b2p = jnp.full((1, VP), -1e30, jnp.float32).at[0, :V].set(
        b2.astype(jnp.float32))

    out_p = attn_output_pallas(inp, he, w1c_T, w1h_T, b1p, w2_T, b2p)
    out = out_p[:, :, :V]                            # drop vocab lane padding

    hidden = (jnp.stack(h_finals, axis=0), jnp.stack(c_finals, axis=0))
    return out, hidden


# --------------------------------------------------------------------------
# Pure-JAX reference (for numerical self-check).
# --------------------------------------------------------------------------
def reference_forward(trg, encoded_src, emb, lstm_params, w1, b1, w2, b2):
    x = emb[trg]
    inp = x
    h_finals, c_finals = [], []
    for (wih, whh, bih, bhh) in lstm_params:
        B = inp.shape[1]
        H = whh.shape[1]
        h0 = jnp.zeros((B, H), jnp.float32)
        c0 = jnp.zeros((B, H), jnp.float32)

        def step(carry, x_t):
            h, c = carry
            gates = x_t @ wih.T + h @ whh.T + bih + bhh
            i, f, g, o = jnp.split(gates, 4, axis=-1)
            i = jax.nn.sigmoid(i); f = jax.nn.sigmoid(f)
            g = jnp.tanh(g); o = jax.nn.sigmoid(o)
            c = f * c + i * g
            h = o * jnp.tanh(c)
            return (h, c), h

        (hT, cT), ys = jax.lax.scan(step, (h0, c0), inp)
        h_finals.append(hT); c_finals.append(cT)
        inp = ys
    output = inp
    h_e = jnp.transpose(encoded_src, (1, 0, 2))
    h_d = jnp.transpose(output, (1, 0, 2))
    attn = jnp.einsum('bth,bsh->bts', h_d, h_e)
    attn = jax.nn.softmax(attn, axis=2)
    context = jnp.transpose(jnp.einsum('bts,bsh->bth', attn, h_e), (1, 0, 2))
    cat = jnp.concatenate([context, output], axis=2)
    z = jnp.tanh(cat @ w1.T + b1)
    logits = z @ w2.T + b2
    out = jax.nn.log_softmax(logits, axis=2)
    return out, (jnp.stack(h_finals), jnp.stack(c_finals))


if __name__ == "__main__":
    key = jax.random.PRNGKey(0)
    V, E, H, L = 64, 32, 32, 2          # vocab, embed, hidden, num_layers
    T, S, B = 8, 12, 2                  # trg_len, src_len, batch

    ks = jax.random.split(key, 12)
    # embedding: (rand - 0.5) * 2  -> uniform in [-1, 1)
    emb = (jax.random.uniform(ks[0], (V, E), dtype=jnp.float32) - 0.5) * 2.0

    scale = 1.0 / jnp.sqrt(jnp.float32(H))
    lstm_params = []
    for l in range(L):
        in_dim = E if l == 0 else H
        k1, k2, k3, k4 = jax.random.split(ks[1 + l], 4)
        wih = jax.random.uniform(k1, (4 * H, in_dim), minval=-scale, maxval=scale)
        whh = jax.random.uniform(k2, (4 * H, H), minval=-scale, maxval=scale)
        bih = jax.random.uniform(k3, (4 * H,), minval=-scale, maxval=scale)
        bhh = jax.random.uniform(k4, (4 * H,), minval=-scale, maxval=scale)
        lstm_params.append((wih, whh, bih, bhh))

    w1 = jax.random.uniform(ks[5], (E, 2 * H), minval=-0.1, maxval=0.1)
    b1 = jax.random.uniform(ks[6], (E,), minval=-0.1, maxval=0.1)
    w2 = emb                            # weight tying: linear2.weight = embedding.weight
    b2 = jax.random.uniform(ks[7], (V,), minval=-0.1, maxval=0.1)

    trg = jax.random.randint(ks[8], (T, B), 0, V)
    encoded_src = jax.random.normal(ks[9], (S, B, H), dtype=jnp.float32)

    fwd = jax.jit(basic_attention_decoder_forward)
    out, (h_n, c_n) = fwd(trg, encoded_src, emb, lstm_params, w1, b1, w2, b2)
    out = jax.block_until_ready(out)
    h_n = jax.block_until_ready(h_n)
    c_n = jax.block_until_ready(c_n)

    assert out.shape == (T, B, V)
    assert h_n.shape == (L, B, H) and c_n.shape == (L, B, H)

    # numerical self-check against pure-JAX reference
    out_ref, (h_ref, c_ref) = reference_forward(
        trg, encoded_src, emb, lstm_params, w1, b1, w2, b2)
    # out tolerance slightly relaxed to cover the EUP approx-reciprocal softmax.
    assert jnp.max(jnp.abs(out - out_ref)) < 3e-3
    assert jnp.max(jnp.abs(h_n - h_ref)) < 2e-3
    assert jnp.max(jnp.abs(c_n - c_ref)) < 2e-3

    print("KERNEL_OK")
</pallas_src>

<mosaic_0001>
module attributes {stable_mosaic.version = 11 : i64} {
  func.func @_attn_output_kernel(%arg0: i32, %arg1: memref<8x2x128xf32, #tpu.memory_space<vmem>>, %arg2: memref<12x2x128xf32, #tpu.memory_space<vmem>>, %arg3: memref<128x128xf32, #tpu.memory_space<vmem>>, %arg4: memref<128x128xf32, #tpu.memory_space<vmem>>, %arg5: memref<1x128xf32, #tpu.memory_space<vmem>>, %arg6: memref<128x128xf32, #tpu.memory_space<vmem>>, %arg7: memref<1x128xf32, #tpu.memory_space<vmem>>, %arg8: memref<8x2x128xf32, #tpu.memory_space<vmem>>, %arg9: memref<16x128xf32, #tpu.memory_space<vmem>>, %arg10: memref<16x128xf32, #tpu.memory_space<vmem>>) attributes {dimension_semantics = [#tpu.dimension_semantics<parallel>], iteration_bounds = array<i64: 1>, scalar_prefetch = 0 : i64, scratch_operands = 2 : i64, tpu.core_type = #tpu.core_type<tc>, window_params = [{transform_indices = @transform_0, window_bounds = array<i64: 8, 2, 128>}, {transform_indices = @transform_1, window_bounds = array<i64: 12, 2, 128>}, {pipeline_mode = #tpu.pipeline_mode<synchronous>, transform_indices = @transform_2, window_bounds = array<i64: 128, 128>}, {pipeline_mode = #tpu.pipeline_mode<synchronous>, transform_indices = @transform_3, window_bounds = array<i64: 128, 128>}, {pipeline_mode = #tpu.pipeline_mode<synchronous>, transform_indices = @transform_4, window_bounds = array<i64: 1, 128>}, {pipeline_mode = #tpu.pipeline_mode<synchronous>, transform_indices = @transform_5, window_bounds = array<i64: 128, 128>}, {pipeline_mode = #tpu.pipeline_mode<synchronous>, transform_indices = @transform_6, window_bounds = array<i64: 1, 128>}, {transform_indices = @transform_7, window_bounds = array<i64: 8, 2, 128>}]} {
    %c0 = arith.constant 0 : index
    %c0_0 = arith.constant 0 : index
    %c0_1 = arith.constant 0 : index
    %0 = vector.load %arg1[%c0, %c0_0, %c0_1] : memref<8x2x128xf32, #tpu.memory_space<vmem>>, vector<8x2x128xf32>
    %c0_2 = arith.constant 0 : index
    %c0_3 = arith.constant 0 : index
    %c0_4 = arith.constant 0 : index
    %1 = vector.load %arg2[%c0_2, %c0_3, %c0_4] : memref<12x2x128xf32, #tpu.memory_space<vmem>>, vector<12x2x128xf32>
    %2 = vector.extract_strided_slice %0 {offsets = [0, 0, 0], sizes = [8, 1, 128], strides = [1, 1, 1]} : vector<8x2x128xf32> to vector<8x1x128xf32>
    %3 = vector.shape_cast %2 : vector<8x1x128xf32> to vector<8x128xf32>
    %4 = vector.extract_strided_slice %1 {offsets = [0, 0, 0], sizes = [12, 1, 128], strides = [1, 1, 1]} : vector<12x2x128xf32> to vector<12x1x128xf32>
    %5 = vector.shape_cast %4 : vector<12x1x128xf32> to vector<12x128xf32>
    %cst = arith.constant dense<0.000000e+00> : vector<8x12xf32>
    %6 = tpu.matmul %3, %5, %cst {dimension_numbers = #tpu.dot_dimension_numbers<[1], [1], [0], [0], [0, 0, 1, 0], [], []>} : vector<8x128xf32>, vector<12x128xf32>, vector<8x12xf32> -> vector<8x12xf32>
    %cst_5 = arith.constant dense<0xFF800000> : vector<8xf32>
    %7 = vector.multi_reduction <maximumf>, %6, %cst_5 [1] : vector<8x12xf32> to vector<8xf32>
    %8 = vector.shape_cast %7 : vector<8xf32> to vector<8x1xf32>
    %9 = vector.broadcast %8 : vector<8x1xf32> to vector<8x12xf32>
    %10 = arith.subf %6, %9 : vector<8x12xf32>
    %11 = math.exp %10 : vector<8x12xf32>
    %cst_6 = arith.constant dense<0.000000e+00> : vector<8xf32>
    %12 = vector.multi_reduction <add>, %11, %cst_6 [1] : vector<8x12xf32> to vector<8xf32>
    %13 = vector.shape_cast %12 : vector<8xf32> to vector<8x1xf32>
    %14 = tpu.reciprocal %13 {approx = true} : vector<8x1xf32> -> vector<8x1xf32>
    %15 = vector.broadcast %14 : vector<8x1xf32> to vector<8x12xf32>
    %16 = arith.mulf %11, %15 : vector<8x12xf32>
    %cst_7 = arith.constant dense<0.000000e+00> : vector<8x128xf32>
    %17 = tpu.matmul %16, %5, %cst_7 {dimension_numbers = #tpu.dot_dimension_numbers<[1], [0], [0], [1], [0, 0, 1, 1], [], []>} : vector<8x12xf32>, vector<12x128xf32>, vector<8x128xf32> -> vector<8x128xf32>
    %c0_8 = arith.constant 0 : index
    %c0_9 = arith.constant 0 : index
    %18 = vector.load %arg9[%c0_8, %c0_9] : memref<16x128xf32, #tpu.memory_space<vmem>>, vector<8x128xf32>
    tpu.vector_store %arg9[%c0_8, %c0_9], %3 {strides = array<i32>} : memref<16x128xf32, #tpu.memory_space<vmem>>, vector<8x128xf32>,
    %c0_10 = arith.constant 0 : index
    %c0_11 = arith.constant 0 : index
    %19 = vector.load %arg10[%c0_10, %c0_11] : memref<16x128xf32, #tpu.memory_space<vmem>>, vector<8x128xf32>
    tpu.vector_store %arg10[%c0_10, %c0_11], %17 {strides = array<i32>} : memref<16x128xf32, #tpu.memory_space<vmem>>, vector<8x128xf32>,
    %20 = vector.extract_strided_slice %0 {offsets = [0, 1, 0], sizes = [8, 1, 128], strides = [1, 1, 1]} : vector<8x2x128xf32> to vector<8x1x128xf32>
    %21 = vector.shape_cast %20 : vector<8x1x128xf32> to vector<8x128xf32>
    %22 = vector.extract_strided_slice %1 {offsets = [0, 1, 0], sizes = [12, 1, 128], strides = [1, 1, 1]} : vector<12x2x128xf32> to vector<12x1x128xf32>
    %23 = vector.shape_cast %22 : vector<12x1x128xf32> to vector<12x128xf32>
    %cst_12 = arith.constant dense<0.000000e+00> : vector<8x12xf32>
    %24 = tpu.matmul %21, %23, %cst_12 {dimension_numbers = #tpu.dot_dimension_numbers<[1], [1], [0], [0], [0, 0, 1, 0], [], []>} : vector<8x128xf32>, vector<12x128xf32>, vector<8x12xf32> -> vector<8x12xf32>
    %cst_13 = arith.constant dense<0xFF800000> : vector<8xf32>
    %25 = vector.multi_reduction <maximumf>, %24, %cst_13 [1] : vector<8x12xf32> to vector<8xf32>
    %26 = vector.shape_cast %25 : vector<8xf32> to vector<8x1xf32>
    %27 = vector.broadcast %26 : vector<8x1xf32> to vector<8x12xf32>
    %28 = arith.subf %24, %27 : vector<8x12xf32>
    %29 = math.exp %28 : vector<8x12xf32>
    %cst_14 = arith.constant dense<0.000000e+00> : vector<8xf32>
    %30 = vector.multi_reduction <add>, %29, %cst_14 [1] : vector<8x12xf32> to vector<8xf32>
    %31 = vector.shape_cast %30 : vector<8xf32> to vector<8x1xf32>
    %32 = tpu.reciprocal %31 {approx = true} : vector<8x1xf32> -> vector<8x1xf32>
    %33 = vector.broadcast %32 : vector<8x1xf32> to vector<8x12xf32>
    %34 = arith.mulf %29, %33 : vector<8x12xf32>
    %cst_15 = arith.constant dense<0.000000e+00> : vector<8x128xf32>
    %35 = tpu.matmul %34, %23, %cst_15 {dimension_numbers = #tpu.dot_dimension_numbers<[1], [0], [0], [1], [0, 0, 1, 1], [], []>} : vector<8x12xf32>, vector<12x128xf32>, vector<8x128xf32> -> vector<8x128xf32>
    %c8 = arith.constant 8 : index
    %c0_16 = arith.constant 0 : index
    %36 = vector.load %arg9[%c8, %c0_16] : memref<16x128xf32, #tpu.memory_space<vmem>>, vector<8x128xf32>
    tpu.vector_store %arg9[%c8, %c0_16], %21 {strides = array<i32>} : memref<16x128xf32, #tpu.memory_space<vmem>>, vector<8x128xf32>,
    %c8_17 = arith.constant 8 : index
    %c0_18 = arith.constant 0 : index
    %37 = vector.load %arg10[%c8_17, %c0_18] : memref<16x128xf32, #tpu.memory_space<vmem>>, vector<8x128xf32>
    tpu.vector_store %arg10[%c8_17, %c0_18], %35 {strides = array<i32>} : memref<16x128xf32, #tpu.memory_space<vmem>>, vector<8x128xf32>,
    %c0_19 = arith.constant 0 : index
    %c0_20 = arith.constant 0 : index
    %38 = vector.load %arg10[%c0_19, %c0_20] : memref<16x128xf32, #tpu.memory_space<vmem>>, vector<16x128xf32>
    %c0_21 = arith.constant 0 : index
    %c0_22 = arith.constant 0 : index
    %39 = vector.load %arg3[%c0_21, %c0_22] : memref<128x128xf32, #tpu.memory_space<vmem>>, vector<128x128xf32>
    %cst_23 = arith.constant dense<0.000000e+00> : vector<16x128xf32>
    %40 = tpu.matmul %38, %39, %cst_23 {dimension_numbers = #tpu.dot_dimension_numbers<[1], [0], [0], [1], [0, 0, 1, 1], [], []>} : vector<16x128xf32>, vector<128x128xf32>, vector<16x128xf32> -> vector<16x128xf32>
    %c0_24 = arith.constant 0 : index
    %c0_25 = arith.constant 0 : index
    %41 = vector.load %arg9[%c0_24, %c0_25] : memref<16x128xf32, #tpu.memory_space<vmem>>, vector<16x128xf32>
    %c0_26 = arith.constant 0 : index
    %c0_27 = arith.constant 0 : index
    %42 = vector.load %arg4[%c0_26, %c0_27] : memref<128x128xf32, #tpu.memory_space<vmem>>, vector<128x128xf32>
    %cst_28 = arith.constant dense<0.000000e+00> : vector<16x128xf32>
    %43 = tpu.matmul %41, %42, %cst_28 {dimension_numbers = #tpu.dot_dimension_numbers<[1], [0], [0], [1], [0, 0, 1, 1], [], []>} : vector<16x128xf32>, vector<128x128xf32>, vector<16x128xf32> -> vector<16x128xf32>
    %44 = arith.addf %40, %43 : vector<16x128xf32>
    %c0_29 = arith.constant 0 : index
    %c0_30 = arith.constant 0 : index
    %45 = vector.load %arg5[%c0_29, %c0_30] : memref<1x128xf32, #tpu.memory_space<vmem>>, vector<1x128xf32>
    %46 = vector.broadcast %45 : vector<1x128xf32> to vector<16x128xf32>
    %47 = arith.addf %44, %46 : vector<16x128xf32>
    %48 = math.tanh %47 : vector<16x128xf32>
    %c0_31 = arith.constant 0 : index
    %c0_32 = arith.constant 0 : index
    %49 = vector.load %arg6[%c0_31, %c0_32] : memref<128x128xf32, #tpu.memory_space<vmem>>, vector<128x128xf32>
    %cst_33 = arith.constant dense<0.000000e+00> : vector<16x128xf32>
    %50 = tpu.matmul %48, %49, %cst_33 {dimension_numbers = #tpu.dot_dimension_numbers<[1], [0], [0], [1], [0, 0, 1, 1], [], []>} : vector<16x128xf32>, vector<128x128xf32>, vector<16x128xf32> -> vector<16x128xf32>
    %c0_34 = arith.constant 0 : index
    %c0_35 = arith.constant 0 : index
    %51 = vector.load %arg7[%c0_34, %c0_35] : memref<1x128xf32, #tpu.memory_space<vmem>>, vector<1x128xf32>
    %52 = vector.broadcast %51 : vector<1x128xf32> to vector<16x128xf32>
    %53 = arith.addf %50, %52 : vector<16x128xf32>
    %cst_36 = arith.constant dense<0xFF800000> : vector<16xf32>
    %54 = vector.multi_reduction <maximumf>, %53, %cst_36 [1] : vector<16x128xf32> to vector<16xf32>
    %55 = vector.shape_cast %54 : vector<16xf32> to vector<16x1xf32>
    %56 = vector.broadcast %55 : vector<16x1xf32> to vector<16x128xf32>
    %57 = arith.subf %53, %56 : vector<16x128xf32>
    %58 = math.exp %57 : vector<16x128xf32>
    %cst_37 = arith.constant dense<0.000000e+00> : vector<16xf32>
    %59 = vector.multi_reduction <add>, %58, %cst_37 [1] : vector<16x128xf32> to vector<16xf32>
    %60 = vector.shape_cast %59 : vector<16xf32> to vector<16x1xf32>
    %61 = math.log %60 : vector<16x1xf32>
    %62 = vector.broadcast %61 : vector<16x1xf32> to vector<16x128xf32>
    %63 = arith.subf %57, %62 : vector<16x128xf32>
    %64 = vector.extract_strided_slice %63 {offsets = [0, 0], sizes = [8, 128], strides = [1, 1]} : vector<16x128xf32> to vector<8x128xf32>
    %65 = vector.shape_cast %64 : vector<8x128xf32> to vector<8x1x128xf32>
    %c0_38 = arith.constant 0 : index
    %c0_39 = arith.constant 0 : index
    %c0_40 = arith.constant 0 : index
    %66 = vector.load %arg8[%c0_38, %c0_39, %c0_40] : memref<8x2x128xf32, #tpu.memory_space<vmem>>, vector<8x1x128xf32>
    tpu.vector_store %arg8[%c0_38, %c0_39, %c0_40], %65 {strides = array<i32>} : memref<8x2x128xf32, #tpu.memory_space<vmem>>, vector<8x1x128xf32>,
    %67 = vector.extract_strided_slice %63 {offsets = [8, 0], sizes = [8, 128], strides = [1, 1]} : vector<16x128xf32> to vector<8x128xf32>
    %68 = vector.shape_cast %67 : vector<8x128xf32> to vector<8x1x128xf32>
    %c0_41 = arith.constant 0 : index
    %c1 = arith.constant 1 : index
    %c0_42 = arith.constant 0 : index
    %69 = vector.load %arg8[%c0_41, %c1, %c0_42] : memref<8x2x128xf32, #tpu.memory_space<vmem>>, vector<8x1x128xf32>
    tpu.vector_store %arg8[%c0_41, %c1, %c0_42], %68 {strides = array<i32>} : memref<8x2x128xf32, #tpu.memory_space<vmem>>, vector<8x1x128xf32>,
    return
  }
  func.func @transform_0(%arg0: i32) -> (i32, i32, i32) {
    %c0_i32 = arith.constant 0 : i32
    %c0_i32_0 = arith.constant 0 : i32
    %c0_i32_1 = arith.constant 0 : i32
    return %c0_i32, %arg0, %c0_i32_0 : i32, i32, i32
  }
  func.func @transform_1(%arg0: i32) -> (i32, i32, i32) {
    %c0_i32 = arith.constant 0 : i32
    %c0_i32_0 = arith.constant 0 : i32
    %c0_i32_1 = arith.constant 0 : i32
    return %c0_i32, %arg0, %c0_i32_0 : i32, i32, i32
  }
  func.func @transform_2(%arg0: i32) -> (i32, i32) {
    %c0_i32 = arith.constant 0 : i32
    %c0_i32_0 = arith.constant 0 : i32
    %c0_i32_1 = arith.constant 0 : i32
    return %c0_i32, %c0_i32_0 : i32, i32
  }
  func.func @transform_3(%arg0: i32) -> (i32, i32) {
    %c0_i32 = arith.constant 0 : i32
    %c0_i32_0 = arith.constant 0 : i32
    %c0_i32_1 = arith.constant 0 : i32
    return %c0_i32, %c0_i32_0 : i32, i32
  }
  func.func @transform_4(%arg0: i32) -> (i32, i32) {
    %c0_i32 = arith.constant 0 : i32
    %c0_i32_0 = arith.constant 0 : i32
    %c0_i32_1 = arith.constant 0 : i32
    return %c0_i32, %c0_i32_0 : i32, i32
  }
  func.func @transform_5(%arg0: i32) -> (i32, i32) {
    %c0_i32 = arith.constant 0 : i32
    %c0_i32_0 = arith.constant 0 : i32
    %c0_i32_1 = arith.constant 0 : i32
    return %c0_i32, %c0_i32_0 : i32, i32
  }
  func.func @transform_6(%arg0: i32) -> (i32, i32) {
    %c0_i32 = arith.constant 0 : i32
    %c0_i32_0 = arith.constant 0 : i32
    %c0_i32_1 = arith.constant 0 : i32
    return %c0_i32, %c0_i32_0 : i32, i32
  }
  func.func @transform_7(%arg0: i32) -> (i32, i32, i32) {
    %c0_i32 = arith.constant 0 : i32
    %c0_i32_0 = arith.constant 0 : i32
    %c0_i32_1 = arith.constant 0 : i32
    return %c0_i32, %arg0, %c0_i32_0 : i32, i32, i32
  }
}

module attributes {stable_mosaic.version = 11 : i64} {
  func.func @_lstm_recurrence_kernel(%arg0: i32, %arg1: memref<8x2x512xf32, #tpu.memory_space<vmem>>, %arg2: memref<128x512xf32, #tpu.memory_space<vmem>>, %arg3: memref<2x128xf32, #tpu.memory_space<vmem>>, %arg4: memref<2x128xf32, #tpu.memory_space<vmem>>, %arg5: memref<8x2x128xf32, #tpu.memory_space<vmem>>, %arg6: memref<2x128xf32, #tpu.memory_space<vmem>>, %arg7: memref<2x128xf32, #tpu.memory_space<vmem>>) attributes {dimension_semantics = [#tpu.dimension_semantics<parallel>], iteration_bounds = array<i64: 1>, scalar_prefetch = 0 : i64, scratch_operands = 0 : i64, tpu.core_type = #tpu.core_type<tc>, window_params = [{transform_indices = @transform_0, window_bounds = array<i64: 8, 2, 512>}, {pipeline_mode = #tpu.pipeline_mode<synchronous>, transform_indices = @transform_1, window_bounds = array<i64: 128, 512>}, {transform_indices = @transform_2, window_bounds = array<i64: 2, 128>}, {transform_indices = @transform_3, window_bounds = array<i64: 2, 128>}, {transform_indices = @transform_4, window_bounds = array<i64: 8, 2, 128>}, {transform_indices = @transform_5, window_bounds = array<i64: 2, 128>}, {transform_indices = @transform_6, window_bounds = array<i64: 2, 128>}]} {
    %c0 = arith.constant 0 : index
    %c0_0 = arith.constant 0 : index
    %0 = vector.load %arg2[%c0, %c0_0] : memref<128x512xf32, #tpu.memory_space<vmem>>, vector<128x512xf32>
    %c0_1 = arith.constant 0 : index
    %c0_2 = arith.constant 0 : index
    %1 = vector.load %arg3[%c0_1, %c0_2] : memref<2x128xf32, #tpu.memory_space<vmem>>, vector<2x128xf32>
    %c0_3 = arith.constant 0 : index
    %c0_4 = arith.constant 0 : index
    %2 = vector.load %arg4[%c0_3, %c0_4] : memref<2x128xf32, #tpu.memory_space<vmem>>, vector<2x128xf32>
    %c0_i32 = arith.constant 0 : i32
    %3 = arith.index_cast %c0_i32 : i32 to index
    %c0_5 = arith.constant 0 : index
    %c0_6 = arith.constant 0 : index
    %4 = vector.load %arg1[%3, %c0_5, %c0_6] : memref<8x2x512xf32, #tpu.memory_space<vmem>>, vector<1x2x512xf32>
    %5 = vector.shape_cast %4 : vector<1x2x512xf32> to vector<2x512xf32>
    %cst = arith.constant dense<0.000000e+00> : vector<2x512xf32>
    %6 = tpu.matmul %1, %0, %cst {dimension_numbers = #tpu.dot_dimension_numbers<[1], [0], [0], [1], [0, 0, 1, 1], [], []>} : vector<2x128xf32>, vector<128x512xf32>, vector<2x512xf32> -> vector<2x512xf32>
    %7 = arith.addf %5, %6 : vector<2x512xf32>
    %8 = vector.extract_strided_slice %7 {offsets = [0, 0], sizes = [2, 128], strides = [1, 1]} : vector<2x512xf32> to vector<2x128xf32>
    %9 = arith.negf %8 : vector<2x128xf32>
    %10 = math.exp %9 : vector<2x128xf32>
    %cst_7 = arith.constant 1.000000e+00 : f32
    %11 = vector.broadcast %cst_7 : f32 to vector<2x128xf32>
    %12 = arith.addf %11, %10 : vector<2x128xf32>
    %13 = arith.divf %11, %12 : vector<2x128xf32>
    %14 = vector.extract_strided_slice %7 {offsets = [0, 128], sizes = [2, 128], strides = [1, 1]} : vector<2x512xf32> to vector<2x128xf32>
    %15 = arith.negf %14 : vector<2x128xf32>
    %16 = math.exp %15 : vector<2x128xf32>
    %cst_8 = arith.constant 1.000000e+00 : f32
    %17 = vector.broadcast %cst_8 : f32 to vector<2x128xf32>
    %18 = arith.addf %17, %16 : vector<2x128xf32>
    %19 = arith.divf %17, %18 : vector<2x128xf32>
    %20 = vector.extract_strided_slice %7 {offsets = [0, 256], sizes = [2, 128], strides = [1, 1]} : vector<2x512xf32> to vector<2x128xf32>
    %21 = math.tanh %20 : vector<2x128xf32>
    %22 = vector.extract_strided_slice %7 {offsets = [0, 384], sizes = [2, 128], strides = [1, 1]} : vector<2x512xf32> to vector<2x128xf32>
    %23 = arith.negf %22 : vector<2x128xf32>
    %24 = math.exp %23 : vector<2x128xf32>
    %cst_9 = arith.constant 1.000000e+00 : f32
    %25 = vector.broadcast %cst_9 : f32 to vector<2x128xf32>
    %26 = arith.addf %25, %24 : vector<2x128xf32>
    %27 = arith.divf %25, %26 : vector<2x128xf32>
    %28 = arith.mulf %19, %2 : vector<2x128xf32>
    %29 = arith.mulf %13, %21 : vector<2x128xf32>
    %30 = arith.addf %28, %29 : vector<2x128xf32>
    %31 = math.tanh %30 : vector<2x128xf32>
    %32 = arith.mulf %27, %31 : vector<2x128xf32>
    %33 = arith.index_cast %c0_i32 : i32 to index
    %c0_10 = arith.constant 0 : index
    %c0_11 = arith.constant 0 : index
    %34 = vector.load %arg5[%33, %c0_10, %c0_11] : memref<8x2x128xf32, #tpu.memory_space<vmem>>, vector<1x2x128xf32>
    %35 = vector.shape_cast %34 : vector<1x2x128xf32> to vector<2x128xf32>
    %36 = vector.shape_cast %32 : vector<2x128xf32> to vector<1x2x128xf32>
    tpu.vector_store %arg5[%33, %c0_10, %c0_11], %36 {strides = array<i32>} : memref<8x2x128xf32, #tpu.memory_space<vmem>>, vector<1x2x128xf32>,
    %c1_i32 = arith.constant 1 : i32
    %37 = arith.index_cast %c1_i32 : i32 to index
    %c0_12 = arith.constant 0 : index
    %c0_13 = arith.constant 0 : index
    %38 = vector.load %arg1[%37, %c0_12, %c0_13] : memref<8x2x512xf32, #tpu.memory_space<vmem>>, vector<1x2x512xf32>
    %39 = vector.shape_cast %38 : vector<1x2x512xf32> to vector<2x512xf32>
    %cst_14 = arith.constant dense<0.000000e+00> : vector<2x512xf32>
    %40 = tpu.matmul %32, %0, %cst_14 {dimension_numbers = #tpu.dot_dimension_numbers<[1], [0], [0], [1], [0, 0, 1, 1], [], []>} : vector<2x128xf32>, vector<128x512xf32>, vector<2x512xf32> -> vector<2x512xf32>
    %41 = arith.addf %39, %40 : vector<2x512xf32>
    %42 = vector.extract_strided_slice %41 {offsets = [0, 0], sizes = [2, 128], strides = [1, 1]} : vector<2x512xf32> to vector<2x128xf32>
    %43 = arith.negf %42 : vector<2x128xf32>
    %44 = math.exp %43 : vector<2x128xf32>
    %cst_15 = arith.constant 1.000000e+00 : f32
    %45 = vector.broadcast %cst_15 : f32 to vector<2x128xf32>
    %46 = arith.addf %45, %44 : vector<2x128xf32>
    %47 = arith.divf %45, %46 : vector<2x128xf32>
    %48 = vector.extract_strided_slice %41 {offsets = [0, 128], sizes = [2, 128], strides = [1, 1]} : vector<2x512xf32> to vector<2x128xf32>
    %49 = arith.negf %48 : vector<2x128xf32>
    %50 = math.exp %49 : vector<2x128xf32>
    %cst_16 = arith.constant 1.000000e+00 : f32
    %51 = vector.broadcast %cst_16 : f32 to vector<2x128xf32>
    %52 = arith.addf %51, %50 : vector<2x128xf32>
    %53 = arith.divf %51, %52 : vector<2x128xf32>
    %54 = vector.extract_strided_slice %41 {offsets = [0, 256], sizes = [2, 128], strides = [1, 1]} : vector<2x512xf32> to vector<2x128xf32>
    %55 = math.tanh %54 : vector<2x128xf32>
    %56 = vector.extract_strided_slice %41 {offsets = [0, 384], sizes = [2, 128], strides = [1, 1]} : vector<2x512xf32> to vector<2x128xf32>
    %57 = arith.negf %56 : vector<2x128xf32>
    %58 = math.exp %57 : vector<2x128xf32>
    %cst_17 = arith.constant 1.000000e+00 : f32
    %59 = vector.broadcast %cst_17 : f32 to vector<2x128xf32>
    %60 = arith.addf %59, %58 : vector<2x128xf32>
    %61 = arith.divf %59, %60 : vector<2x128xf32>
    %62 = arith.mulf %53, %30 : vector<2x128xf32>
    %63 = arith.mulf %47, %55 : vector<2x128xf32>
    %64 = arith.addf %62, %63 : vector<2x128xf32>
    %65 = math.tanh %64 : vector<2x128xf32>
    %66 = arith.mulf %61, %65 : vector<2x128xf32>
    %67 = arith.index_cast %c1_i32 : i32 to index
    %c0_18 = arith.constant 0 : index
    %c0_19 = arith.constant 0 : index
    %68 = vector.load %arg5[%67, %c0_18, %c0_19] : memref<8x2x128xf32, #tpu.memory_space<vmem>>, vector<1x2x128xf32>
    %69 = vector.shape_cast %68 : vector<1x2x128xf32> to vector<2x128xf32>
    %70 = vector.shape_cast %66 : vector<2x128xf32> to vector<1x2x128xf32>
    tpu.vector_store %arg5[%67, %c0_18, %c0_19], %70 {strides = array<i32>} : memref<8x2x128xf32, #tpu.memory_space<vmem>>, vector<1x2x128xf32>,
    %c2_i32 = arith.constant 2 : i32
    %71 = arith.index_cast %c2_i32 : i32 to index
    %c0_20 = arith.constant 0 : index
    %c0_21 = arith.constant 0 : index
    %72 = vector.load %arg1[%71, %c0_20, %c0_21] : memref<8x2x512xf32, #tpu.memory_space<vmem>>, vector<1x2x512xf32>
    %73 = vector.shape_cast %72 : vector<1x2x512xf32> to vector<2x512xf32>
    %cst_22 = arith.constant dense<0.000000e+00> : vector<2x512xf32>
    %74 = tpu.matmul %66, %0, %cst_22 {dimension_numbers = #tpu.dot_dimension_numbers<[1], [0], [0], [1], [0, 0, 1, 1], [], []>} : vector<2x128xf32>, vector<128x512xf32>, vector<2x512xf32> -> vector<2x512xf32>
    %75 = arith.addf %73, %74 : vector<2x512xf32>
    %76 = vector.extract_strided_slice %75 {offsets = [0, 0], sizes = [2, 128], strides = [1, 1]} : vector<2x512xf32> to vector<2x128xf32>
    %77 = arith.negf %76 : vector<2x128xf32>
    %78 = math.exp %77 : vector<2x128xf32>
    %cst_23 = arith.constant 1.000000e+00 : f32
    %79 = vector.broadcast %cst_23 : f32 to vector<2x128xf32>
    %80 = arith.addf %79, %78 : vector<2x128xf32>
    %81 = arith.divf %79, %80 : vector<2x128xf32>
    %82 = vector.extract_strided_slice %75 {offsets = [0, 128], sizes = [2, 128], strides = [1, 1]} : vector<2x512xf32> to vector<2x128xf32>
    %83 = arith.negf %82 : vector<2x128xf32>
    %84 = math.exp %83 : vector<2x128xf32>
    %cst_24 = arith.constant 1.000000e+00 : f32
    %85 = vector.broadcast %cst_24 : f32 to vector<2x128xf32>
    %86 = arith.addf %85, %84 : vector<2x128xf32>
    %87 = arith.divf %85, %86 : vector<2x128xf32>
    %88 = vector.extract_strided_slice %75 {offsets = [0, 256], sizes = [2, 128], strides = [1, 1]} : vector<2x512xf32> to vector<2x128xf32>
    %89 = math.tanh %88 : vector<2x128xf32>
    %90 = vector.extract_strided_slice %75 {offsets = [0, 384], sizes = [2, 128], strides = [1, 1]} : vector<2x512xf32> to vector<2x128xf32>
    %91 = arith.negf %90 : vector<2x128xf32>
    %92 = math.exp %91 : vector<2x128xf32>
    %cst_25 = arith.constant 1.000000e+00 : f32
    %93 = vector.broadcast %cst_25 : f32 to vector<2x128xf32>
    %94 = arith.addf %93, %92 : vector<2x128xf32>
    %95 = arith.divf %93, %94 : vector<2x128xf32>
    %96 = arith.mulf %87, %64 : vector<2x128xf32>
    %97 = arith.mulf %81, %89 : vector<2x128xf32>
    %98 = arith.addf %96, %97 : vector<2x128xf32>
    %99 = math.tanh %98 : vector<2x128xf32>
    %100 = arith.mulf %95, %99 : vector<2x128xf32>
    %101 = arith.index_cast %c2_i32 : i32 to index
    %c0_26 = arith.constant 0 : index
    %c0_27 = arith.constant 0 : index
    %102 = vector.load %arg5[%101, %c0_26, %c0_27] : memref<8x2x128xf32, #tpu.memory_space<vmem>>, vector<1x2x128xf32>
    %103 = vector.shape_cast %102 : vector<1x2x128xf32> to vector<2x128xf32>
    %104 = vector.shape_cast %100 : vector<2x128xf32> to vector<1x2x128xf32>
    tpu.vector_store %arg5[%101, %c0_26, %c0_27], %104 {strides = array<i32>} : memref<8x2x128xf32, #tpu.memory_space<vmem>>, vector<1x2x128xf32>,
    %c3_i32 = arith.constant 3 : i32
    %105 = arith.index_cast %c3_i32 : i32 to index
    %c0_28 = arith.constant 0 : index
    %c0_29 = arith.constant 0 : index
    %106 = vector.load %arg1[%105, %c0_28, %c0_29] : memref<8x2x512xf32, #tpu.memory_space<vmem>>, vector<1x2x512xf32>
    %107 = vector.shape_cast %106 : vector<1x2x512xf32> to vector<2x512xf32>
    %cst_30 = arith.constant dense<0.000000e+00> : vector<2x512xf32>
    %108 = tpu.matmul %100, %0, %cst_30 {dimension_numbers = #tpu.dot_dimension_numbers<[1], [0], [0], [1], [0, 0, 1, 1], [], []>} : vector<2x128xf32>, vector<128x512xf32>, vector<2x512xf32> -> vector<2x512xf32>
    %109 = arith.addf %107, %108 : vector<2x512xf32>
    %110 = vector.extract_strided_slice %109 {offsets = [0, 0], sizes = [2, 128], strides = [1, 1]} : vector<2x512xf32> to vector<2x128xf32>
    %111 = arith.negf %110 : vector<2x128xf32>
    %112 = math.exp %111 : vector<2x128xf32>
    %cst_31 = arith.constant 1.000000e+00 : f32
    %113 = vector.broadcast %cst_31 : f32 to vector<2x128xf32>
    %114 = arith.addf %113, %112 : vector<2x128xf32>
    %115 = arith.divf %113, %114 : vector<2x128xf32>
    %116 = vector.extract_strided_slice %109 {offsets = [0, 128], sizes = [2, 128], strides = [1, 1]} : vector<2x512xf32> to vector<2x128xf32>
    %117 = arith.negf %116 : vector<2x128xf32>
    %118 = math.exp %117 : vector<2x128xf32>
    %cst_32 = arith.constant 1.000000e+00 : f32
    %119 = vector.broadcast %cst_32 : f32 to vector<2x128xf32>
    %120 = arith.addf %119, %118 : vector<2x128xf32>
    %121 = arith.divf %119, %120 : vector<2x128xf32>
    %122 = vector.extract_strided_slice %109 {offsets = [0, 256], sizes = [2, 128], strides = [1, 1]} : vector<2x512xf32> to vector<2x128xf32>
    %123 = math.tanh %122 : vector<2x128xf32>
    %124 = vector.extract_strided_slice %109 {offsets = [0, 384], sizes = [2, 128], strides = [1, 1]} : vector<2x512xf32> to vector<2x128xf32>
    %125 = arith.negf %124 : vector<2x128xf32>
    %126 = math.exp %125 : vector<2x128xf32>
    %cst_33 = arith.constant 1.000000e+00 : f32
    %127 = vector.broadcast %cst_33 : f32 to vector<2x128xf32>
    %128 = arith.addf %127, %126 : vector<2x128xf32>
    %129 = arith.divf %127, %128 : vector<2x128xf32>
    %130 = arith.mulf %121, %98 : vector<2x128xf32>
    %131 = arith.mulf %115, %123 : vector<2x128xf32>
    %132 = arith.addf %130, %131 : vector<2x128xf32>
    %133 = math.tanh %132 : vector<2x128xf32>
    %134 = arith.mulf %129, %133 : vector<2x128xf32>
    %135 = arith.index_cast %c3_i32 : i32 to index
    %c0_34 = arith.constant 0 : index
    %c0_35 = arith.constant 0 : index
    %136 = vector.load %arg5[%135, %c0_34, %c0_35] : memref<8x2x128xf32, #tpu.memory_space<vmem>>, vector<1x2x128xf32>
    %137 = vector.shape_cast %136 : vector<1x2x128xf32> to vector<2x128xf32>
    %138 = vector.shape_cast %134 : vector<2x128xf32> to vector<1x2x128xf32>
    tpu.vector_store %arg5[%135, %c0_34, %c0_35], %138 {strides = array<i32>} : memref<8x2x128xf32, #tpu.memory_space<vmem>>, vector<1x2x128xf32>,
    %c4_i32 = arith.constant 4 : i32
    %139 = arith.index_cast %c4_i32 : i32 to index
    %c0_36 = arith.constant 0 : index
    %c0_37 = arith.constant 0 : index
    %140 = vector.load %arg1[%139, %c0_36, %c0_37] : memref<8x2x512xf32, #tpu.memory_space<vmem>>, vector<1x2x512xf32>
    %141 = vector.shape_cast %140 : vector<1x2x512xf32> to vector<2x512xf32>
    %cst_38 = arith.constant dense<0.000000e+00> : vector<2x512xf32>
    %142 = tpu.matmul %134, %0, %cst_38 {dimension_numbers = #tpu.dot_dimension_numbers<[1], [0], [0], [1], [0, 0, 1, 1], [], []>} : vector<2x128xf32>, vector<128x512xf32>, vector<2x512xf32> -> vector<2x512xf32>
    %143 = arith.addf %141, %142 : vector<2x512xf32>
    %144 = vector.extract_strided_slice %143 {offsets = [0, 0], sizes = [2, 128], strides = [1, 1]} : vector<2x512xf32> to vector<2x128xf32>
    %145 = arith.negf %144 : vector<2x128xf32>
    %146 = math.exp %145 : vector<2x128xf32>
    %cst_39 = arith.constant 1.000000e+00 : f32
    %147 = vector.broadcast %cst_39 : f32 to vector<2x128xf32>
    %148 = arith.addf %147, %146 : vector<2x128xf32>
    %149 = arith.divf %147, %148 : vector<2x128xf32>
    %150 = vector.extract_strided_slice %143 {offsets = [0, 128], sizes = [2, 128], strides = [1, 1]} : vector<2x512xf32> to vector<2x128xf32>
    %151 = arith.negf %150 : vector<2x128xf32>
    %152 = math.exp %151 : vector<2x128xf32>
    %cst_40 = arith.constant 1.000000e+00 : f32
    %153 = vector.broadcast %cst_40 : f32 to vector<2x128xf32>
    %154 = arith.addf %153, %152 : vector<2x128xf32>
    %155 = arith.divf %153, %154 : vector<2x128xf32>
    %156 = vector.extract_strided_slice %143 {offsets = [0, 256], sizes = [2, 128], strides = [1, 1]} : vector<2x512xf32> to vector<2x128xf32>
    %157 = math.tanh %156 : vector<2x128xf32>
    %158 = vector.extract_strided_slice %143 {offsets = [0, 384], sizes = [2, 128], strides = [1, 1]} : vector<2x512xf32> to vector<2x128xf32>
    %159 = arith.negf %158 : vector<2x128xf32>
    %160 = math.exp %159 : vector<2x128xf32>
    %cst_41 = arith.constant 1.000000e+00 : f32
    %161 = vector.broadcast %cst_41 : f32 to vector<2x128xf32>
    %162 = arith.addf %161, %160 : vector<2x128xf32>
    %163 = arith.divf %161, %162 : vector<2x128xf32>
    %164 = arith.mulf %155, %132 : vector<2x128xf32>
    %165 = arith.mulf %149, %157 : vector<2x128xf32>
    %166 = arith.addf %164, %165 : vector<2x128xf32>
    %167 = math.tanh %166 : vector<2x128xf32>
    %168 = arith.mulf %163, %167 : vector<2x128xf32>
    %169 = arith.index_cast %c4_i32 : i32 to index
    %c0_42 = arith.constant 0 : index
    %c0_43 = arith.constant 0 : index
    %170 = vector.load %arg5[%169, %c0_42, %c0_43] : memref<8x2x128xf32, #tpu.memory_space<vmem>>, vector<1x2x128xf32>
    %171 = vector.shape_cast %170 : vector<1x2x128xf32> to vector<2x128xf32>
    %172 = vector.shape_cast %168 : vector<2x128xf32> to vector<1x2x128xf32>
    tpu.vector_store %arg5[%169, %c0_42, %c0_43], %172 {strides = array<i32>} : memref<8x2x128xf32, #tpu.memory_space<vmem>>, vector<1x2x128xf32>,
    %c5_i32 = arith.constant 5 : i32
    %173 = arith.index_cast %c5_i32 : i32 to index
    %c0_44 = arith.constant 0 : index
    %c0_45 = arith.constant 0 : index
    %174 = vector.load %arg1[%173, %c0_44, %c0_45] : memref<8x2x512xf32, #tpu.memory_space<vmem>>, vector<1x2x512xf32>
    %175 = vector.shape_cast %174 : vector<1x2x512xf32> to vector<2x512xf32>
    %cst_46 = arith.constant dense<0.000000e+00> : vector<2x512xf32>
    %176 = tpu.matmul %168, %0, %cst_46 {dimension_numbers = #tpu.dot_dimension_numbers<[1], [0], [0], [1], [0, 0, 1, 1], [], []>} : vector<2x128xf32>, vector<128x512xf32>, vector<2x512xf32> -> vector<2x512xf32>
    %177 = arith.addf %175, %176 : vector<2x512xf32>
    %178 = vector.extract_strided_slice %177 {offsets = [0, 0], sizes = [2, 128], strides = [1, 1]} : vector<2x512xf32> to vector<2x128xf32>
    %179 = arith.negf %178 : vector<2x128xf32>
    %180 = math.exp %179 : vector<2x128xf32>
    %cst_47 = arith.constant 1.000000e+00 : f32
    %181 = vector.broadcast %cst_47 : f32 to vector<2x128xf32>
    %182 = arith.addf %181, %180 : vector<2x128xf32>
    %183 = arith.divf %181, %182 : vector<2x128xf32>
    %184 = vector.extract_strided_slice %177 {offsets = [0, 128], sizes = [2, 128], strides = [1, 1]} : vector<2x512xf32> to vector<2x128xf32>
    %185 = arith.negf %184 : vector<2x128xf32>
    %186 = math.exp %185 : vector<2x128xf32>
    %cst_48 = arith.constant 1.000000e+00 : f32
    %187 = vector.broadcast %cst_48 : f32 to vector<2x128xf32>
    %188 = arith.addf %187, %186 : vector<2x128xf32>
    %189 = arith.divf %187, %188 : vector<2x128xf32>
    %190 = vector.extract_strided_slice %177 {offsets = [0, 256], sizes = [2, 128], strides = [1, 1]} : vector<2x512xf32> to vector<2x128xf32>
    %191 = math.tanh %190 : vector<2x128xf32>
    %192 = vector.extract_strided_slice %177 {offsets = [0, 384], sizes = [2, 128], strides = [1, 1]} : vector<2x512xf32> to vector<2x128xf32>
    %193 = arith.negf %192 : vector<2x128xf32>
    %194 = math.exp %193 : vector<2x128xf32>
    %cst_49 = arith.constant 1.000000e+00 : f32
    %195 = vector.broadcast %cst_49 : f32 to vector<2x128xf32>
    %196 = arith.addf %195, %194 : vector<2x128xf32>
    %197 = arith.divf %195, %196 : vector<2x128xf32>
    %198 = arith.mulf %189, %166 : vector<2x128xf32>
    %199 = arith.mulf %183, %191 : vector<2x128xf32>
    %200 = arith.addf %198, %199 : vector<2x128xf32>
    %201 = math.tanh %200 : vector<2x128xf32>
    %202 = arith.mulf %197, %201 : vector<2x128xf32>
    %203 = arith.index_cast %c5_i32 : i32 to index
    %c0_50 = arith.constant 0 : index
    %c0_51 = arith.constant 0 : index
    %204 = vector.load %arg5[%203, %c0_50, %c0_51] : memref<8x2x128xf32, #tpu.memory_space<vmem>>, vector<1x2x128xf32>
    %205 = vector.shape_cast %204 : vector<1x2x128xf32> to vector<2x128xf32>
    %206 = vector.shape_cast %202 : vector<2x128xf32> to vector<1x2x128xf32>
    tpu.vector_store %arg5[%203, %c0_50, %c0_51], %206 {strides = array<i32>} : memref<8x2x128xf32, #tpu.memory_space<vmem>>, vector<1x2x128xf32>,
    %c6_i32 = arith.constant 6 : i32
    %207 = arith.index_cast %c6_i32 : i32 to index
    %c0_52 = arith.constant 0 : index
    %c0_53 = arith.constant 0 : index
    %208 = vector.load %arg1[%207, %c0_52, %c0_53] : memref<8x2x512xf32, #tpu.memory_space<vmem>>, vector<1x2x512xf32>
    %209 = vector.shape_cast %208 : vector<1x2x512xf32> to vector<2x512xf32>
    %cst_54 = arith.constant dense<0.000000e+00> : vector<2x512xf32>
    %210 = tpu.matmul %202, %0, %cst_54 {dimension_numbers = #tpu.dot_dimension_numbers<[1], [0], [0], [1], [0, 0, 1, 1], [], []>} : vector<2x128xf32>, vector<128x512xf32>, vector<2x512xf32> -> vector<2x512xf32>
    %211 = arith.addf %209, %210 : vector<2x512xf32>
    %212 = vector.extract_strided_slice %211 {offsets = [0, 0], sizes = [2, 128], strides = [1, 1]} : vector<2x512xf32> to vector<2x128xf32>
    %213 = arith.negf %212 : vector<2x128xf32>
    %214 = math.exp %213 : vector<2x128xf32>
    %cst_55 = arith.constant 1.000000e+00 : f32
    %215 = vector.broadcast %cst_55 : f32 to vector<2x128xf32>
    %216 = arith.addf %215, %214 : vector<2x128xf32>
    %217 = arith.divf %215, %216 : vector<2x128xf32>
    %218 = vector.extract_strided_slice %211 {offsets = [0, 128], sizes = [2, 128], strides = [1, 1]} : vector<2x512xf32> to vector<2x128xf32>
    %219 = arith.negf %218 : vector<2x128xf32>
    %220 = math.exp %219 : vector<2x128xf32>
    %cst_56 = arith.constant 1.000000e+00 : f32
    %221 = vector.broadcast %cst_56 : f32 to vector<2x128xf32>
    %222 = arith.addf %221, %220 : vector<2x128xf32>
    %223 = arith.divf %221, %222 : vector<2x128xf32>
    %224 = vector.extract_strided_slice %211 {offsets = [0, 256], sizes = [2, 128], strides = [1, 1]} : vector<2x512xf32> to vector<2x128xf32>
    %225 = math.tanh %224 : vector<2x128xf32>
    %226 = vector.extract_strided_slice %211 {offsets = [0, 384], sizes = [2, 128], strides = [1, 1]} : vector<2x512xf32> to vector<2x128xf32>
    %227 = arith.negf %226 : vector<2x128xf32>
    %228 = math.exp %227 : vector<2x128xf32>
    %cst_57 = arith.constant 1.000000e+00 : f32
    %229 = vector.broadcast %cst_57 : f32 to vector<2x128xf32>
    %230 = arith.addf %229, %228 : vector<2x128xf32>
    %231 = arith.divf %229, %230 : vector<2x128xf32>
    %232 = arith.mulf %223, %200 : vector<2x128xf32>
    %233 = arith.mulf %217, %225 : vector<2x128xf32>
    %234 = arith.addf %232, %233 : vector<2x128xf32>
    %235 = math.tanh %234 : vector<2x128xf32>
    %236 = arith.mulf %231, %235 : vector<2x128xf32>
    %237 = arith.index_cast %c6_i32 : i32 to index
    %c0_58 = arith.constant 0 : index
    %c0_59 = arith.constant 0 : index
    %238 = vector.load %arg5[%237, %c0_58, %c0_59] : memref<8x2x128xf32, #tpu.memory_space<vmem>>, vector<1x2x128xf32>
    %239 = vector.shape_cast %238 : vector<1x2x128xf32> to vector<2x128xf32>
    %240 = vector.shape_cast %236 : vector<2x128xf32> to vector<1x2x128xf32>
    tpu.vector_store %arg5[%237, %c0_58, %c0_59], %240 {strides = array<i32>} : memref<8x2x128xf32, #tpu.memory_space<vmem>>, vector<1x2x128xf32>,
    %c7_i32 = arith.constant 7 : i32
    %241 = arith.index_cast %c7_i32 : i32 to index
    %c0_60 = arith.constant 0 : index
    %c0_61 = arith.constant 0 : index
    %242 = vector.load %arg1[%241, %c0_60, %c0_61] : memref<8x2x512xf32, #tpu.memory_space<vmem>>, vector<1x2x512xf32>
    %243 = vector.shape_cast %242 : vector<1x2x512xf32> to vector<2x512xf32>
    %cst_62 = arith.constant dense<0.000000e+00> : vector<2x512xf32>
    %244 = tpu.matmul %236, %0, %cst_62 {dimension_numbers = #tpu.dot_dimension_numbers<[1], [0], [0], [1], [0, 0, 1, 1], [], []>} : vector<2x128xf32>, vector<128x512xf32>, vector<2x512xf32> -> vector<2x512xf32>
    %245 = arith.addf %243, %244 : vector<2x512xf32>
    %246 = vector.extract_strided_slice %245 {offsets = [0, 0], sizes = [2, 128], strides = [1, 1]} : vector<2x512xf32> to vector<2x128xf32>
    %247 = arith.negf %246 : vector<2x128xf32>
    %248 = math.exp %247 : vector<2x128xf32>
    %cst_63 = arith.constant 1.000000e+00 : f32
    %249 = vector.broadcast %cst_63 : f32 to vector<2x128xf32>
    %250 = arith.addf %249, %248 : vector<2x128xf32>
    %251 = arith.divf %249, %250 : vector<2x128xf32>
    %252 = vector.extract_strided_slice %245 {offsets = [0, 128], sizes = [2, 128], strides = [1, 1]} : vector<2x512xf32> to vector<2x128xf32>
    %253 = arith.negf %252 : vector<2x128xf32>
    %254 = math.exp %253 : vector<2x128xf32>
    %cst_64 = arith.constant 1.000000e+00 : f32
    %255 = vector.broadcast %cst_64 : f32 to vector<2x128xf32>
    %256 = arith.addf %255, %254 : vector<2x128xf32>
    %257 = arith.divf %255, %256 : vector<2x128xf32>
    %258 = vector.extract_strided_slice %245 {offsets = [0, 256], sizes = [2, 128], strides = [1, 1]} : vector<2x512xf32> to vector<2x128xf32>
    %259 = math.tanh %258 : vector<2x128xf32>
    %260 = vector.extract_strided_slice %245 {offsets = [0, 384], sizes = [2, 128], strides = [1, 1]} : vector<2x512xf32> to vector<2x128xf32>
    %261 = arith.negf %260 : vector<2x128xf32>
    %262 = math.exp %261 : vector<2x128xf32>
    %cst_65 = arith.constant 1.000000e+00 : f32
    %263 = vector.broadcast %cst_65 : f32 to vector<2x128xf32>
    %264 = arith.addf %263, %262 : vector<2x128xf32>
    %265 = arith.divf %263, %264 : vector<2x128xf32>
    %266 = arith.mulf %257, %234 : vector<2x128xf32>
    %267 = arith.mulf %251, %259 : vector<2x128xf32>
    %268 = arith.addf %266, %267 : vector<2x128xf32>
    %269 = math.tanh %268 : vector<2x128xf32>
    %270 = arith.mulf %265, %269 : vector<2x128xf32>
    %271 = arith.index_cast %c7_i32 : i32 to index
    %c0_66 = arith.constant 0 : index
    %c0_67 = arith.constant 0 : index
    %272 = vector.load %arg5[%271, %c0_66, %c0_67] : memref<8x2x128xf32, #tpu.memory_space<vmem>>, vector<1x2x128xf32>
    %273 = vector.shape_cast %272 : vector<1x2x128xf32> to vector<2x128xf32>
    %274 = vector.shape_cast %270 : vector<2x128xf32> to vector<1x2x128xf32>
    tpu.vector_store %arg5[%271, %c0_66, %c0_67], %274 {strides = array<i32>} : memref<8x2x128xf32, #tpu.memory_space<vmem>>, vector<1x2x128xf32>,
    %c8_i32 = arith.constant 8 : i32
    %c0_68 = arith.constant 0 : index
    %c0_69 = arith.constant 0 : index
    %275 = vector.load %arg6[%c0_68, %c0_69] : memref<2x128xf32, #tpu.memory_space<vmem>>, vector<2x128xf32>
    tpu.vector_store %arg6[%c0_68, %c0_69], %270 {strides = array<i32>} : memref<2x128xf32, #tpu.memory_space<vmem>>, vector<2x128xf32>,
    %c0_70 = arith.constant 0 : index
    %c0_71 = arith.constant 0 : index
    %276 = vector.load %arg7[%c0_70, %c0_71] : memref<2x128xf32, #tpu.memory_space<vmem>>, vector<2x128xf32>
    tpu.vector_store %arg7[%c0_70, %c0_71], %268 {strides = array<i32>} : memref<2x128xf32, #tpu.memory_space<vmem>>, vector<2x128xf32>,
    return
  }
  func.func @transform_0(%arg0: i32) -> (i32, i32, i32) {
    %c0_i32 = arith.constant 0 : i32
    %c0_i32_0 = arith.constant 0 : i32
    %c0_i32_1 = arith.constant 0 : i32
    return %c0_i32, %arg0, %c0_i32_0 : i32, i32, i32
  }
  func.func @transform_1(%arg0: i32) -> (i32, i32) {
    %c0_i32 = arith.constant 0 : i32
    %c0_i32_0 = arith.constant 0 : i32
    %c0_i32_1 = arith.constant 0 : i32
    return %c0_i32, %c0_i32_0 : i32, i32
  }
  func.func @transform_2(%arg0: i32) -> (i32, i32) {
    %c0_i32 = arith.constant 0 : i32
    %c0_i32_0 = arith.constant 0 : i32
    return %arg0, %c0_i32 : i32, i32
  }
  func.func @transform_3(%arg0: i32) -> (i32, i32) {
    %c0_i32 = arith.constant 0 : i32
    %c0_i32_0 = arith.constant 0 : i32
    return %arg0, %c0_i32 : i32, i32
  }
  func.func @transform_4(%arg0: i32) -> (i32, i32, i32) {
    %c0_i32 = arith.constant 0 : i32
    %c0_i32_0 = arith.constant 0 : i32
    %c0_i32_1 = arith.constant 0 : i32
    return %c0_i32, %arg0, %c0_i32_0 : i32, i32, i32
  }
  func.func @transform_5(%arg0: i32) -> (i32, i32) {
    %c0_i32 = arith.constant 0 : i32
    %c0_i32_0 = arith.constant 0 : i32
    return %arg0, %c0_i32 : i32, i32
  }
  func.func @transform_6(%arg0: i32) -> (i32, i32) {
    %c0_i32 = arith.constant 0 : i32
    %c0_i32_0 = arith.constant 0 : i32
    return %arg0, %c0_i32 : i32, i32
  }
}

</mosaic_0001>

<llo_original>
// kernel: basic_attention_decoder_forward.5
$region0: #{basic_attention_decoder_forward.5}
  #allocation0 [shape = 'u32[]', space=smem, size = 0x4, offset = 0x4, fixed_abs, tag = 'smem constant byte address 0x4 - core index']
  #allocation1 [shape = 'u32[72,128]{1,0:T(1,128)}', space=vmem, size = 0x9000, scoped, tag = 'internal scratch']
  #allocation2 [shape = 'f32[16,128]{1,0:T(8,128)}', space=vmem, size = 0x2000, scoped, tag = 'scratch operand']
  #allocation3 [shape = 'f32[16,128]{1,0:T(8,128)}', space=vmem, size = 0x2000, scoped, tag = 'scratch operand']
  %s0 = inlined_call_operand.vmem [shape: f32[8,2,128], index: 0, kind: input, shape index: {}]
  %s1 = inlined_call_operand.vmem [shape: f32[12,2,128], index: 1, kind: input, shape index: {}]
  %s2 = inlined_call_operand.vmem [shape: f32[128,128], index: 2, kind: input, shape index: {}]
  %s3 = inlined_call_operand.vmem [shape: f32[128,128], index: 3, kind: input, shape index: {}]
  %s4 = inlined_call_operand.vmem [shape: f32[1,128], index: 4, kind: input, shape index: {}]
  %s5 = inlined_call_operand.vmem [shape: f32[128,128], index: 5, kind: input, shape index: {}]
  %s6 = inlined_call_operand.vmem [shape: f32[1,128], index: 6, kind: input, shape index: {}]
  %s7 = inlined_call_operand.hbm [shape: f32[8,2,128], index: 7, kind: output, shape index: {}]
  %s8 = sld [smem:[#allocation0]]
  $region38: #{basic_attention_decoder_forward.5} parent=0
    _
  %s10 = ssub.s32 1, %s8
  %s11 = scalar_select 0, %s10, %s8
  $region1: #{basic_attention_decoder_forward.5} parent=0
    #allocation4 [shape = 'u8[8192]{0}', space=vmem, size = 0x2000, scoped, tag = 'output window, operand 0, single buffered']
    #allocation5 [shape = 's32[1]{0}', space=sflag, size = 0x4, scoped, tag = 'scoped memory for basic_attention_decoder_forward.5']
    %12 = vsyncpa [#allocation5], 0
    // Predicated region
    $region2: #{basic_attention_decoder_forward.5} parent=1 // pred_check
      _
    $region3: #{basic_attention_decoder_forward.5} parent=1 // pred_check_branch
      %14 = sbr.rel (0) target = $region5
    $region4: #{basic_attention_decoder_forward.5} parent=1 // pred_region
      _
    $region5: #{basic_attention_decoder_forward.5} parent=1 // pred_fallthru
      _
    // Predicated region
    $region6: #{basic_attention_decoder_forward.5} parent=1 // pred_check
      _
    $region7: #{basic_attention_decoder_forward.5} parent=1 // pred_check_branch
      %16 = sbr.rel (0) target = $region9
    $region8: #{basic_attention_decoder_forward.5} parent=1 // pred_region
      _
    $region9: #{basic_attention_decoder_forward.5} parent=1 // pred_fallthru
      _
    // Predicated region
    $region10: #{basic_attention_decoder_forward.5} parent=1 // pred_check
      _
    $region11: #{basic_attention_decoder_forward.5} parent=1 // pred_check_branch
      %18 = sbr.rel (0) target = $region13
    $region12: #{basic_attention_decoder_forward.5} parent=1 // pred_region
      _
    $region13: #{basic_attention_decoder_forward.5} parent=1 // pred_fallthru
      _
    // Predicated region
    $region14: #{basic_attention_decoder_forward.5} parent=1 // pred_check
      _
    $region15: #{basic_attention_decoder_forward.5} parent=1 // pred_check_branch
      %20 = sbr.rel (0) target = $region17
    $region16: #{basic_attention_decoder_forward.5} parent=1 // pred_region
      _
    $region17: #{basic_attention_decoder_forward.5} parent=1 // pred_fallthru
      _
    // Predicated region
    $region18: #{basic_attention_decoder_forward.5} parent=1 // pred_check
      _
    $region19: #{basic_attention_decoder_forward.5} parent=1 // pred_check_branch
      %22 = sbr.rel (0) target = $region21
    $region20: #{basic_attention_decoder_forward.5} parent=1 // pred_region
      _
    $region21: #{basic_attention_decoder_forward.5} parent=1 // pred_fallthru
      _
    // Predicated region
    $region22: #{basic_attention_decoder_forward.5} parent=1 // pred_check
      _
    $region23: #{basic_attention_decoder_forward.5} parent=1 // pred_check_branch
      %24 = sbr.rel (0) target = $region25
    $region24: #{basic_attention_decoder_forward.5} parent=1 // pred_region
      _
    $region25: #{basic_attention_decoder_forward.5} parent=1 // pred_fallthru
      _
    // Predicated region
    $region26: #{basic_attention_decoder_forward.5} parent=1 // pred_check
      _
    $region27: #{basic_attention_decoder_forward.5} parent=1 // pred_check_branch
      %26 = sbr.rel (0) target = $region29
    $region28: #{basic_attention_decoder_forward.5} parent=1 // pred_region
      _
    $region29: #{basic_attention_decoder_forward.5} parent=1 // pred_fallthru
      _
    %v27 = vld [vmem:[%s0] sm:$0x3]
    %v28 = vld [vmem:[%s0 + $0x2] sm:$0x3]
    %v29 = vld [vmem:[%s0 + $0x4] sm:$0x3]
    %v30 = vld [vmem:[%s0 + $0x6] sm:$0x3]
    %v31 = vld [vmem:[%s0 + $0x8] sm:$0x3]
    %v32 = vld [vmem:[%s0 + $0xa] sm:$0x3]
    %v33 = vld [vmem:[%s0 + $0xc] sm:$0x3]
    %v34 = vld [vmem:[%s0 + $0xe] sm:$0x3]
    %v35 = vld [vmem:[%s1] sm:$0x3]
    %v36 = vld [vmem:[%s1 + $0x2] sm:$0x3]
    %v37 = vld [vmem:[%s1 + $0x4] sm:$0x3]
    %v38 = vld [vmem:[%s1 + $0x6] sm:$0x3]
    %v39 = vld [vmem:[%s1 + $0x8] sm:$0x3]
    %v40 = vld [vmem:[%s1 + $0xa] sm:$0x3]
    %v41 = vld [vmem:[%s1 + $0xc] sm:$0x3]
    %v42 = vld [vmem:[%s1 + $0xe] sm:$0x3]
    %v43 = vld [vmem:[%s1 + $0x10] sm:$0x3]
    %v44 = vld [vmem:[%s1 + $0x12] sm:$0x3]
    %v45 = vld [vmem:[%s1 + $0x14] sm:$0x3]
    %v46 = vld [vmem:[%s1 + $0x16] sm:$0x3]
    %v55 = vrot.slane %v28, 7
    %vm56 = vcmask 1041409
    %v57 = vsel %vm56, %v55, %v27
    %v58 = vrot.slane %v29, 6
    %vm59 = vcmask 1042434
    %v60 = vsel %vm59, %v58, %v57
    %v61 = vrot.slane %v30, 5
    %vm62 = vcmask 1043459
    %v63 = vsel %vm62, %v61, %v60
    %v64 = vrot.slane %v31, 4
    %vm65 = vcmask 1044484
    %v66 = vsel %vm65, %v64, %v63
    %v67 = vrot.slane %v32, 3
    %vm68 = vcmask 1045509
    %v69 = vsel %vm68, %v67, %v66
    %v70 = vrot.slane %v33, 2
    %vm71 = vcmask 1046534
    %v72 = vsel %vm71, %v70, %v69
    %v73 = vrot.slane %v34, 1
    %vm74 = vcmask 1047559
    %v75 = vsel %vm74, %v73, %v72
    %v89 = vrot.slane %v36, 7
    %v90 = vsel %vm56, %v89, %v35
    %v91 = vrot.slane %v37, 6
    %v92 = vsel %vm59, %v91, %v90
    %v93 = vrot.slane %v38, 5
    %v94 = vsel %vm62, %v93, %v92
    %v95 = vrot.slane %v39, 4
    %v96 = vsel %vm65, %v95, %v94
    %v97 = vrot.slane %v40, 3
    %v98 = vsel %vm68, %v97, %v96
    %v99 = vrot.slane %v41, 2
    %v100 = vsel %vm71, %v99, %v98
    %v101 = vrot.slane %v42, 1
    %v102 = vsel %vm74, %v101, %v100
    %v103 = vrot.slane %v44, 7
    %v104 = vsel %vm56, %v103, %v43
    %v105 = vrot.slane %v45, 6
    %v106 = vsel %vm59, %v105, %v104
    %v107 = vrot.slane %v46, 5
    %v108 = vsel %vm62, %v107, %v106
    %111 = vmatpush.xpose.msra.mxu0 0.0
    %112 = vmatpush.xpose.msra.mxu0 0.0
    %113 = vmatpush.xpose.msra.mxu0 0.0
    %114 = vmatpush.xpose.msra.mxu0 0.0
    %115 = vmatpush.xpose.msra.mxu0 0.0
    %116 = vmatpush.xpose.msra.mxu0 0.0
    %117 = vmatpush.xpose.msra.mxu0 0.0
    %118 = vmatpush.xpose.msra.mxu0 0.0
    %119 = vmatpush.xpose.msra.mxu0 0.0
    %120 = vmatpush.xpose.msra.mxu0 0.0
    %121 = vmatpush.xpose.msra.mxu0 0.0
    %122 = vmatpush.xpose.msra.mxu0 0.0
    %123 = vmatpush.xpose.msra.mxu0 0.0
    %124 = vmatpush.xpose.msra.mxu0 0.0
    %125 = vmatpush.xpose.msra.mxu0 %v108
    %126 = vmatpush.xpose.msra.mxu0 %v102
    %127 = vmatmul.f32.gmra.mxu0 %v75
    %v128 = vpop.f32.mrf.mxu0
    %v129 = vadd.f32 0.0, %v128
    %130 = vdwg.mxu0
    %vm131 = vcmask 97280
    %v132 = vsel %vm131, %v129, -inf
    %133 = vmax.xlane.f32.xlu0 %v132
    %v134 = vpop.xlane.xlu0 %133
    %v135 = vsub.f32 %v129, %v134
    %v136 = vmul.f32 %v135, 1.442695
    %v137 = vpow.pop %v136
    %v138 = vsel %vm131, %v137, 0.0
    %139 = vadd.xlane.f32.xlu0 %v138
    %v140 = vpop.xlane.xlu0 %139
    %v141 = vrcp.pop %v140
    %v142 = vmul.f32 %v137, %v141
    %v144 = vsel %vm131, %v142, 0
    %vm146 = vcmask 1043456
    %v147 = vsel %vm146, %v108, 0
    %149 = vmatpush.msra.mxu0 0.0
    %150 = vmatpush.msra.mxu0 0.0
    %151 = vmatpush.msra.mxu0 0.0
    %152 = vmatpush.msra.mxu0 0.0
    %153 = vmatpush.msra.mxu0 0.0
    %154 = vmatpush.msra.mxu0 0.0
    %155 = vmatpush.msra.mxu0 0.0
    %156 = vmatpush.msra.mxu0 0.0
    %157 = vmatpush.msra.mxu0 0.0
    %158 = vmatpush.msra.mxu0 0.0
    %159 = vmatpush.msra.mxu0 0.0
    %160 = vmatpush.msra.mxu0 0.0
    %161 = vmatpush.msra.mxu0 0.0
    %162 = vmatpush.msra.mxu0 0.0
    %163 = vmatpush.msra.mxu0 %v147
    %164 = vmatpush.msra.mxu0 %v102
    %165 = vmatmul.f32.gmra.mxu0 %v144
    %v166 = vpop.f32.mrf.mxu0
    %v167 = vadd.f32 0.0, %v166
    %168 = vdwg.mxu0
    %169 = vst [vmem:[#allocation2] sm:$0xff] %v75
    %170 = vst [vmem:[#allocation3] sm:$0xff] %v167
    %v171 = vrot.slane %v27, 1
    %v172 = vsel %vm56, %v28, %v171
    %v173 = vrot.slane %v29, 7
    %v174 = vsel %vm59, %v173, %v172
    %v175 = vrot.slane %v30, 6
    %v176 = vsel %vm62, %v175, %v174
    %v177 = vrot.slane %v31, 5
    %v178 = vsel %vm65, %v177, %v176
    %v179 = vrot.slane %v32, 4
    %v180 = vsel %vm68, %v179, %v178
    %v181 = vrot.slane %v33, 3
    %v182 = vsel %vm71, %v181, %v180
    %v183 = vrot.slane %v34, 2
    %v184 = vsel %vm74, %v183, %v182
    %v186 = vrot.slane %v35, 1
    %v187 = vsel %vm56, %v36, %v186
    %v188 = vrot.slane %v37, 7
    %v189 = vsel %vm59, %v188, %v187
    %v190 = vrot.slane %v38, 6
    %v191 = vsel %vm62, %v190, %v189
    %v192 = vrot.slane %v39, 5
    %v193 = vsel %vm65, %v192, %v191
    %v194 = vrot.slane %v40, 4
    %v195 = vsel %vm68, %v194, %v193
    %v196 = vrot.slane %v41, 3
    %v197 = vsel %vm71, %v196, %v195
    %v198 = vrot.slane %v42, 2
    %v199 = vsel %vm74, %v198, %v197
    %v200 = vrot.slane %v43, 1
    %v201 = vsel %vm56, %v44, %v200
    %v202 = vrot.slane %v45, 7
    %v203 = vsel %vm59, %v202, %v201
    %v204 = vrot.slane %v46, 6
    %v205 = vsel %vm62, %v204, %v203
    %208 = vmatpush.xpose.msra.mxu0 0.0
    %209 = vmatpush.xpose.msra.mxu0 0.0
    %210 = vmatpush.xpose.msra.mxu0 0.0
    %211 = vmatpush.xpose.msra.mxu0 0.0
    %212 = vmatpush.xpose.msra.mxu0 0.0
    %213 = vmatpush.xpose.msra.mxu0 0.0
    %214 = vmatpush.xpose.msra.mxu0 0.0
    %215 = vmatpush.xpose.msra.mxu0 0.0
    %216 = vmatpush.xpose.msra.mxu0 0.0
    %217 = vmatpush.xpose.msra.mxu0 0.0
    %218 = vmatpush.xpose.msra.mxu0 0.0
    %219 = vmatpush.xpose.msra.mxu0 0.0
    %220 = vmatpush.xpose.msra.mxu0 0.0
    %221 = vmatpush.xpose.msra.mxu0 0.0
    %222 = vmatpush.xpose.msra.mxu0 %v205
    %223 = vmatpush.xpose.msra.mxu0 %v199
    %224 = vmatmul.f32.gmra.mxu0 %v184
    %v225 = vpop.f32.mrf.mxu0
    %v226 = vadd.f32 0.0, %v225
    %227 = vdwg.mxu0
    %v228 = vsel %vm131, %v226, -inf
    %229 = vmax.xlane.f32.xlu0 %v228
    %v230 = vpop.xlane.xlu0 %229
    %v231 = vsub.f32 %v226, %v230
    %v232 = vmul.f32 %v231, 1.442695
    %v233 = vpow.pop %v232
    %v234 = vsel %vm131, %v233, 0.0
    %235 = vadd.xlane.f32.xlu0 %v234
    %v236 = vpop.xlane.xlu0 %235
    %v237 = vrcp.pop %v236
    %v238 = vmul.f32 %v233, %v237
    %v240 = vsel %vm131, %v238, 0
    %v242 = vsel %vm146, %v205, 0
    %244 = vmatpush.msra.mxu0 0.0
    %245 = vmatpush.msra.mxu0 0.0
    %246 = vmatpush.msra.mxu0 0.0
    %247 = vmatpush.msra.mxu0 0.0
    %248 = vmatpush.msra.mxu0 0.0
    %249 = vmatpush.msra.mxu0 0.0
    %250 = vmatpush.msra.mxu0 0.0
    %251 = vmatpush.msra.mxu0 0.0
    %252 = vmatpush.msra.mxu0 0.0
    %253 = vmatpush.msra.mxu0 0.0
    %254 = vmatpush.msra.mxu0 0.0
    %255 = vmatpush.msra.mxu0 0.0
    %256 = vmatpush.msra.mxu0 0.0
    %257 = vmatpush.msra.mxu0 0.0
    %258 = vmatpush.msra.mxu0 %v242
    %259 = vmatpush.msra.mxu0 %v199
    %260 = vmatmul.f32.gmra.mxu0 %v240
    %v261 = vpop.f32.mrf.mxu0
    %v262 = vadd.f32 0.0, %v261
    %263 = vdwg.mxu0
    %v264 = vsel %vm59, %v55, %v27
    %v265 = vsel %vm62, %v58, %v264
    %v266 = vsel %vm65, %v61, %v265
    %v267 = vsel %vm68, %v64, %v266
    %v268 = vsel %vm71, %v67, %v267
    %v269 = vsel %vm74, %v70, %v268
    %272 = vst [vmem:[#allocation2 + $0x7] sm:$0xfe] %v269
    %273 = vst [vmem:[#allocation2 + $0xf] sm:$0x1] %v73
    %274 = vst [vmem:[#allocation3 + $0x8] sm:$0xff] %v262
    %v275 = vld [vmem:[#allocation3] sm:$0xff]
    %v276 = vld [vmem:[#allocation3 + $0x8] sm:$0xff]
    %v277 = vld [vmem:[%s2] sm:$0xff]
    %v278 = vld [vmem:[%s2 + $0x8] sm:$0xff]
    %v279 = vld [vmem:[%s2 + $0x10] sm:$0xff]
    %v280 = vld [vmem:[%s2 + $0x18] sm:$0xff]
    %v281 = vld [vmem:[%s2 + $0x20] sm:$0xff]
    %v282 = vld [vmem:[%s2 + $0x28] sm:$0xff]
    %v283 = vld [vmem:[%s2 + $0x30] sm:$0xff]
    %v284 = vld [vmem:[%s2 + $0x38] sm:$0xff]
    %v285 = vld [vmem:[%s2 + $0x40] sm:$0xff]
    %v286 = vld [vmem:[%s2 + $0x48] sm:$0xff]
    %v287 = vld [vmem:[%s2 + $0x50] sm:$0xff]
    %v288 = vld [vmem:[%s2 + $0x58] sm:$0xff]
    %v289 = vld [vmem:[%s2 + $0x60] sm:$0xff]
    %v290 = vld [vmem:[%s2 + $0x68] sm:$0xff]
    %v291 = vld [vmem:[%s2 + $0x70] sm:$0xff]
    %v292 = vld [vmem:[%s2 + $0x78] sm:$0xff]
    %v293 = vld [vmem:[#allocation2] sm:$0xff]
    %v294 = vld [vmem:[#allocation2 + $0x8] sm:$0xff]
    %v295 = vld [vmem:[%s3] sm:$0xff]
    %v296 = vld [vmem:[%s3 + $0x8] sm:$0xff]
    %v297 = vld [vmem:[%s3 + $0x10] sm:$0xff]
    %v298 = vld [vmem:[%s3 + $0x18] sm:$0xff]
    %v299 = vld [vmem:[%s3 + $0x20] sm:$0xff]
    %v300 = vld [vmem:[%s3 + $0x28] sm:$0xff]
    %v301 = vld [vmem:[%s3 + $0x30] sm:$0xff]
    %v302 = vld [vmem:[%s3 + $0x38] sm:$0xff]
    %v303 = vld [vmem:[%s3 + $0x40] sm:$0xff]
    %v304 = vld [vmem:[%s3 + $0x48] sm:$0xff]
    %v305 = vld [vmem:[%s3 + $0x50] sm:$0xff]
    %v306 = vld [vmem:[%s3 + $0x58] sm:$0xff]
    %v307 = vld [vmem:[%s3 + $0x60] sm:$0xff]
    %v308 = vld [vmem:[%s3 + $0x68] sm:$0xff]
    %v309 = vld [vmem:[%s3 + $0x70] sm:$0xff]
    %v310 = vld [vmem:[%s3 + $0x78] sm:$0xff]
    %311 = vmatpush.msra.mxu0 %v310
    %312 = vmatpush.msra.mxu0 %v309
    %313 = vmatpush.msra.mxu0 %v308
    %314 = vmatpush.msra.mxu0 %v307
    %315 = vmatpush.msra.mxu0 %v306
    %316 = vmatpush.msra.mxu0 %v305
    %317 = vmatpush.msra.mxu0 %v304
    %318 = vmatpush.msra.mxu0 %v303
    %319 = vmatpush.msra.mxu0 %v302
    %320 = vmatpush.msra.mxu0 %v301
    %321 = vmatpush.msra.mxu0 %v300
    %322 = vmatpush.msra.mxu0 %v299
    %323 = vmatpush.msra.mxu0 %v298
    %324 = vmatpush.msra.mxu0 %v297
    %325 = vmatpush.msra.mxu0 %v296
    %326 = vmatpush.msra.mxu0 %v295
    %327 = vmatmul.f32.gmra.mxu0 %v293
    %v328 = vpop.f32.mrf.mxu0
    %v329 = vadd.f32 0.0, %v328
    %330 = vmatmul.f32.gmra.mxu0 %v294
    %v331 = vpop.f32.mrf.mxu0
    %v332 = vadd.f32 0.0, %v331
    %333 = vdwg.mxu0
    %334 = vmatpush.msra.mxu0 %v292
    %335 = vmatpush.msra.mxu0 %v291
    %336 = vmatpush.msra.mxu0 %v290
    %337 = vmatpush.msra.mxu0 %v289
    %338 = vmatpush.msra.mxu0 %v288
    %339 = vmatpush.msra.mxu0 %v287
    %340 = vmatpush.msra.mxu0 %v286
    %341 = vmatpush.msra.mxu0 %v285
    %342 = vmatpush.msra.mxu0 %v284
    %343 = vmatpush.msra.mxu0 %v283
    %344 = vmatpush.msra.mxu0 %v282
    %345 = vmatpush.msra.mxu0 %v281
    %346 = vmatpush.msra.mxu0 %v280
    %347 = vmatpush.msra.mxu0 %v279
    %348 = vmatpush.msra.mxu0 %v278
    %349 = vmatpush.msra.mxu0 %v277
    %350 = vmatmul.f32.gmra.mxu0 %v275
    %v351 = vpop.f32.mrf.mxu0
    %v352 = vadd.f32 %v329, %v351
    %353 = vmatmul.f32.gmra.mxu0 %v276
    %v354 = vpop.f32.mrf.mxu0
    %v355 = vadd.f32 %v332, %v354
    %356 = vdwg.mxu0
    %v357 = vld [vmem:[%s4] sm:$0x1]
    %v359 = vperm.slane %v357, 0
    %v361 = vadd.f32 %v352, %v359
    %v362 = vadd.f32 %v355, %v359
    %v363 = vtanh.pop %v361
    %v364 = vtanh.pop %v362
    %v365 = vld [vmem:[%s5] sm:$0xff]
    %v366 = vld [vmem:[%s5 + $0x8] sm:$0xff]
    %v367 = vld [vmem:[%s5 + $0x10] sm:$0xff]
    %v368 = vld [vmem:[%s5 + $0x18] sm:$0xff]
    %v369 = vld [vmem:[%s5 + $0x20] sm:$0xff]
    %v370 = vld [vmem:[%s5 + $0x28] sm:$0xff]
    %v371 = vld [vmem:[%s5 + $0x30] sm:$0xff]
    %v372 = vld [vmem:[%s5 + $0x38] sm:$0xff]
    %v373 = vld [vmem:[%s5 + $0x40] sm:$0xff]
    %v374 = vld [vmem:[%s5 + $0x48] sm:$0xff]
    %v375 = vld [vmem:[%s5 + $0x50] sm:$0xff]
    %v376 = vld [vmem:[%s5 + $0x58] sm:$0xff]
    %v377 = vld [vmem:[%s5 + $0x60] sm:$0xff]
    %v378 = vld [vmem:[%s5 + $0x68] sm:$0xff]
    %v379 = vld [vmem:[%s5 + $0x70] sm:$0xff]
    %v380 = vld [vmem:[%s5 + $0x78] sm:$0xff]
    %v381 = vld [vmem:[%s6] sm:$0x1]
    %v383 = vperm.slane %v381, 0
    %385 = vmatpush.msra.mxu0 %v380
    %386 = vmatpush.msra.mxu0 %v379
    %387 = vmatpush.msra.mxu0 %v378
    %388 = vmatpush.msra.mxu0 %v377
    %389 = vmatpush.msra.mxu0 %v376
    %390 = vmatpush.msra.mxu0 %v375
    %391 = vmatpush.msra.mxu0 %v374
    %392 = vmatpush.msra.mxu0 %v373
    %393 = vmatpush.msra.mxu0 %v372
    %394 = vmatpush.msra.mxu0 %v371
    %395 = vmatpush.msra.mxu0 %v370
    %396 = vmatpush.msra.mxu0 %v369
    %397 = vmatpush.msra.mxu0 %v368
    %398 = vmatpush.msra.mxu0 %v367
    %399 = vmatpush.msra.mxu0 %v366
    %400 = vmatpush.msra.mxu0 %v365
    %401 = vmatmul.f32.gmra.mxu0 %v363
    %v402 = vpop.f32.mrf.mxu0
    %v403 = vadd.f32 %v383, %v402
    %404 = vmatmul.f32.gmra.mxu0 %v364
    %v405 = vpop.f32.mrf.mxu0
    %v406 = vadd.f32 %v383, %v405
    %407 = vdwg.mxu0
    %408 = vmax.xlane.f32.xlu0 %v403
    %v409 = vpop.xlane.xlu0 %408
    %410 = vmax.xlane.f32.xlu0 %v406
    %v411 = vpop.xlane.xlu0 %410
    %v412 = vsub.f32 %v403, %v409
    %v413 = vsub.f32 %v406, %v411
    %v414 = vmul.f32 %v412, 1.442695
    %v415 = vpow.pop %v414
    %v416 = vmul.f32 %v413, 1.442695
    %v417 = vpow.pop %v416
    %418 = vadd.xlane.f32.xlu0 %v415
    %v419 = vpop.xlane.xlu0 %418
    %420 = vadd.xlane.f32.xlu0 %v417
    %v421 = vpop.xlane.xlu0 %420
    %v422 = vlog2.pop %v419
    %v423 = vmul.f32 %v422, 0.6931472
    %v424 = vlog2.pop %v421
    %v425 = vmul.f32 %v424, 0.6931472
    %v426 = vsub.f32 %v412, %v423
    %v427 = vsub.f32 %v413, %v425
    %v429 = vrot.slane %v426, 1
    %v430 = vrot.slane %v426, 2
    %v431 = vrot.slane %v426, 3
    %v432 = vrot.slane %v426, 4
    %v433 = vrot.slane %v426, 5
    %v434 = vrot.slane %v426, 6
    %v435 = vrot.slane %v426, 7
    %443 = vst [vmem:[#allocation4] sm:$0x1] %v426
    %444 = vst [vmem:[#allocation4 + $0x2] sm:$0x1] %v429
    %445 = vst [vmem:[#allocation4 + $0x4] sm:$0x1] %v430
    %446 = vst [vmem:[#allocation4 + $0x6] sm:$0x1] %v431
    %447 = vst [vmem:[#allocation4 + $0x8] sm:$0x1] %v432
    %448 = vst [vmem:[#allocation4 + $0xa] sm:$0x1] %v433
    %449 = vst [vmem:[#allocation4 + $0xc] sm:$0x1] %v434
    %450 = vst [vmem:[#allocation4 + $0xe] sm:$0x1] %v435
    %v452 = vrot.slane %v427, 1
    %v453 = vrot.slane %v427, 2
    %v454 = vrot.slane %v427, 3
    %v455 = vrot.slane %v427, 4
    %v456 = vrot.slane %v427, 5
    %v457 = vrot.slane %v427, 6
    %v458 = vrot.slane %v427, 7
    %466 = vst [vmem:[#allocation4 + $0x1] sm:$0x1] %v427
    %467 = vst [vmem:[#allocation4 + $0x3] sm:$0x1] %v452
    %468 = vst [vmem:[#allocation4 + $0x5] sm:$0x1] %v453
    %469 = vst [vmem:[#allocation4 + $0x7] sm:$0x1] %v454
    %470 = vst [vmem:[#allocation4 + $0x9] sm:$0x1] %v455
    %471 = vst [vmem:[#allocation4 + $0xb] sm:$0x1] %v456
    %472 = vst [vmem:[#allocation4 + $0xd] sm:$0x1] %v457
    %473 = vst [vmem:[#allocation4 + $0xf] sm:$0x1] %v458
    // Predicated region
    $region30: #{basic_attention_decoder_forward.5} parent=1 // pred_check
      _
    $region31: #{basic_attention_decoder_forward.5} parent=1 // pred_check_branch
      %475 = sbr.rel (0) target = $region33
    $region32: #{basic_attention_decoder_forward.5} parent=1 // pred_region
      %477 = vsyncadd [#allocation5], 0
      %s478 = sshll.u32 [#allocation4], 4
      %s479 = int_to_ptr.vmem [resolvable:$true] %s478
      %s480 = sshll.u32 %s7, 4
      %s481 = int_to_ptr.hbm [resolvable:$true] %s480
      %486 = dma.vmem_to_hbm [thread:$0]  %s479, 256, %s481, [#allocation5], 32, 32, 2
    $region33: #{basic_attention_decoder_forward.5} parent=1 // pred_fallthru
      _
    // Predicated region
    $region34: #{basic_attention_decoder_forward.5} parent=1 // pred_check
      _
    $region35: #{basic_attention_decoder_forward.5} parent=1 // pred_check_branch
      %488 = sbr.rel (0) target = $region37
    $region36: #{basic_attention_decoder_forward.5} parent=1 // pred_region
      %490 = dma.done [#allocation5], 256
    $region37: #{basic_attention_decoder_forward.5} parent=1 // pred_fallthru
      _
    %491 = vsyncpa [#allocation5], 1

// kernel: basic_attention_decoder_forward.3
$region0: #{basic_attention_decoder_forward.3}
  #allocation0 [shape = 'u32[]', space=smem, size = 0x4, offset = 0x4, fixed_abs, tag = 'smem constant byte address 0x4 - core index']
  #allocation1 [shape = 'u32[72,128]{1,0:T(1,128)}', space=vmem, size = 0x9000, scoped, tag = 'internal scratch']
  %s0 = inlined_call_operand.vmem [shape: f32[8,2,512], index: 0, kind: input, shape index: {}]
  %s1 = inlined_call_operand.vmem [shape: f32[128,512], index: 1, kind: input, shape index: {}]
  %s2 = inlined_call_operand.vmem [shape: f32[2,128], index: 2, kind: input, shape index: {}, may-alias: {2,3}]
  %s3 = inlined_call_operand.vmem [shape: f32[2,128], index: 3, kind: input, shape index: {}, may-alias: {2,3}]
  %s4 = inlined_call_operand.vmem [shape: f32[8,2,128], index: 4, kind: output, shape index: {0}]
  %s5 = inlined_call_operand.vmem [shape: f32[2,128], index: 5, kind: output, shape index: {1}]
  %s6 = inlined_call_operand.vmem [shape: f32[2,128], index: 6, kind: output, shape index: {2}]
  %7 = xla_tuple %s4, %s5, %s6
  %s8 = sld [smem:[#allocation0]]
  $region42: #{basic_attention_decoder_forward.3} parent=0
    _
  %s10 = ssub.s32 1, %s8
  %s11 = scalar_select 0, %s10, %s8
  // Predicated region
  $region2: #{basic_attention_decoder_forward.3} parent=0 // pred_check
    _
  $region3: #{basic_attention_decoder_forward.3} parent=0 // pred_check_branch
    %13 = sbr.rel (0) target = $region5
  $region4: #{basic_attention_decoder_forward.3} parent=0 // pred_region
    _
  $region5: #{basic_attention_decoder_forward.3} parent=0 // pred_fallthru
    _
  // Predicated region
  $region6: #{basic_attention_decoder_forward.3} parent=0 // pred_check
    _
  $region7: #{basic_attention_decoder_forward.3} parent=0 // pred_check_branch
    %15 = sbr.rel (0) target = $region9
  $region8: #{basic_attention_decoder_forward.3} parent=0 // pred_region
    _
  $region9: #{basic_attention_decoder_forward.3} parent=0 // pred_fallthru
    _
  // Predicated region
  $region10: #{basic_attention_decoder_forward.3} parent=0 // pred_check
    _
  $region11: #{basic_attention_decoder_forward.3} parent=0 // pred_check_branch
    %17 = sbr.rel (0) target = $region13
  $region12: #{basic_attention_decoder_forward.3} parent=0 // pred_region
    _
  $region13: #{basic_attention_decoder_forward.3} parent=0 // pred_fallthru
    _
  // Predicated region
  $region14: #{basic_attention_decoder_forward.3} parent=0 // pred_check
    _
  $region15: #{basic_attention_decoder_forward.3} parent=0 // pred_check_branch
    %19 = sbr.rel (0) target = $region17
  $region16: #{basic_attention_decoder_forward.3} parent=0 // pred_region
    _
  $region17: #{basic_attention_decoder_forward.3} parent=0 // pred_fallthru
    _
  %v20 = vld [vmem:[%s1] sm:$0xff]
  %v21 = vld [vmem:[%s1 + $0x8] sm:$0xff]
  %v22 = vld [vmem:[%s1 + $0x10] sm:$0xff]
  %v23 = vld [vmem:[%s1 + $0x18] sm:$0xff]
  %v24 = vld [vmem:[%s1 + $0x20] sm:$0xff]
  %v25 = vld [vmem:[%s1 + $0x28] sm:$0xff]
  %v26 = vld [vmem:[%s1 + $0x30] sm:$0xff]
  %v27 = vld [vmem:[%s1 + $0x38] sm:$0xff]
  %v28 = vld [vmem:[%s1 + $0x40] sm:$0xff]
  %v29 = vld [vmem:[%s1 + $0x48] sm:$0xff]
  %v30 = vld [vmem:[%s1 + $0x50] sm:$0xff]
  %v31 = vld [vmem:[%s1 + $0x58] sm:$0xff]
  %v32 = vld [vmem:[%s1 + $0x60] sm:$0xff]
  %v33 = vld [vmem:[%s1 + $0x68] sm:$0xff]
  %v34 = vld [vmem:[%s1 + $0x70] sm:$0xff]
  %v35 = vld [vmem:[%s1 + $0x78] sm:$0xff]
  %v36 = vld [vmem:[%s1 + $0x80] sm:$0xff]
  %v37 = vld [vmem:[%s1 + $0x88] sm:$0xff]
  %v38 = vld [vmem:[%s1 + $0x90] sm:$0xff]
  %v39 = vld [vmem:[%s1 + $0x98] sm:$0xff]
  %v40 = vld [vmem:[%s1 + $0xa0] sm:$0xff]
  %v41 = vld [vmem:[%s1 + $0xa8] sm:$0xff]
  %v42 = vld [vmem:[%s1 + $0xb0] sm:$0xff]
  %v43 = vld [vmem:[%s1 + $0xb8] sm:$0xff]
  %v44 = vld [vmem:[%s1 + $0xc0] sm:$0xff]
  %v45 = vld [vmem:[%s1 + $0xc8] sm:$0xff]
  %v46 = vld [vmem:[%s1 + $0xd0] sm:$0xff]
  %v47 = vld [vmem:[%s1 + $0xd8] sm:$0xff]
  %v48 = vld [vmem:[%s1 + $0xe0] sm:$0xff]
  %v49 = vld [vmem:[%s1 + $0xe8] sm:$0xff]
  %v50 = vld [vmem:[%s1 + $0xf0] sm:$0xff]
  %v51 = vld [vmem:[%s1 + $0xf8] sm:$0xff]
  %v52 = vld [vmem:[%s1 + $0x100] sm:$0xff]
  %v53 = vld [vmem:[%s1 + $0x108] sm:$0xff]
  %v54 = vld [vmem:[%s1 + $0x110] sm:$0xff]
  %v55 = vld [vmem:[%s1 + $0x118] sm:$0xff]
  %v56 = vld [vmem:[%s1 + $0x120] sm:$0xff]
  %v57 = vld [vmem:[%s1 + $0x128] sm:$0xff]
  %v58 = vld [vmem:[%s1 + $0x130] sm:$0xff]
  %v59 = vld [vmem:[%s1 + $0x138] sm:$0xff]
  %v60 = vld [vmem:[%s1 + $0x140] sm:$0xff]
  %v61 = vld [vmem:[%s1 + $0x148] sm:$0xff]
  %v62 = vld [vmem:[%s1 + $0x150] sm:$0xff]
  %v63 = vld [vmem:[%s1 + $0x158] sm:$0xff]
  %v64 = vld [vmem:[%s1 + $0x160] sm:$0xff]
  %v65 = vld [vmem:[%s1 + $0x168] sm:$0xff]
  %v66 = vld [vmem:[%s1 + $0x170] sm:$0xff]
  %v67 = vld [vmem:[%s1 + $0x178] sm:$0xff]
  %v68 = vld [vmem:[%s1 + $0x180] sm:$0xff]
  %v69 = vld [vmem:[%s1 + $0x188] sm:$0xff]
  %v70 = vld [vmem:[%s1 + $0x190] sm:$0xff]
  %v71 = vld [vmem:[%s1 + $0x198] sm:$0xff]
  %v72 = vld [vmem:[%s1 + $0x1a0] sm:$0xff]
  %v73 = vld [vmem:[%s1 + $0x1a8] sm:$0xff]
  %v74 = vld [vmem:[%s1 + $0x1b0] sm:$0xff]
  %v75 = vld [vmem:[%s1 + $0x1b8] sm:$0xff]
  %v76 = vld [vmem:[%s1 + $0x1c0] sm:$0xff]
  %v77 = vld [vmem:[%s1 + $0x1c8] sm:$0xff]
  %v78 = vld [vmem:[%s1 + $0x1d0] sm:$0xff]
  %v79 = vld [vmem:[%s1 + $0x1d8] sm:$0xff]
  %v80 = vld [vmem:[%s1 + $0x1e0] sm:$0xff]
  %v81 = vld [vmem:[%s1 + $0x1e8] sm:$0xff]
  %v82 = vld [vmem:[%s1 + $0x1f0] sm:$0xff]
  %v83 = vld [vmem:[%s1 + $0x1f8] sm:$0xff]
  %v84 = vld [vmem:[%s2] sm:$0x3]
  %v85 = vld [vmem:[%s3] sm:$0x3]
  %v86 = vld [vmem:[%s0] sm:$0xff]
  %87 = vmatpush.msra.mxu0 %v80
  %88 = vmatpush.msra.mxu0 %v76
  %89 = vmatpush.msra.mxu0 %v72
  %90 = vmatpush.msra.mxu0 %v68
  %91 = vmatpush.msra.mxu0 %v64
  %92 = vmatpush.msra.mxu0 %v60
  %93 = vmatpush.msra.mxu0 %v56
  %94 = vmatpush.msra.mxu0 %v52
  %95 = vmatpush.msra.mxu0 %v48
  %96 = vmatpush.msra.mxu0 %v44
  %97 = vmatpush.msra.mxu0 %v40
  %98 = vmatpush.msra.mxu0 %v36
  %99 = vmatpush.msra.mxu0 %v32
  %100 = vmatpush.msra.mxu0 %v28
  %101 = vmatpush.msra.mxu0 %v24
  %102 = vmatpush.msra.mxu0 %v20
  %103 = vmatmul.f32.gmra.mxu0 %v84
  %v104 = vpop.f32.mrf.mxu0
  %v105 = vadd.f32 0.0, %v104
  %106 = vdwg.mxu0
  %107 = vmatpush.msra.mxu0 %v81
  %108 = vmatpush.msra.mxu0 %v77
  %109 = vmatpush.msra.mxu0 %v73
  %110 = vmatpush.msra.mxu0 %v69
  %111 = vmatpush.msra.mxu0 %v65
  %112 = vmatpush.msra.mxu0 %v61
  %113 = vmatpush.msra.mxu0 %v57
  %114 = vmatpush.msra.mxu0 %v53
  %115 = vmatpush.msra.mxu0 %v49
  %116 = vmatpush.msra.mxu0 %v45
  %117 = vmatpush.msra.mxu0 %v41
  %118 = vmatpush.msra.mxu0 %v37
  %119 = vmatpush.msra.mxu0 %v33
  %120 = vmatpush.msra.mxu0 %v29
  %121 = vmatpush.msra.mxu0 %v25
  %122 = vmatpush.msra.mxu0 %v21
  %123 = vmatmul.f32.gmra.mxu0 %v84
  %v124 = vpop.f32.mrf.mxu0
  %v125 = vadd.f32 0.0, %v124
  %126 = vdwg.mxu0
  %127 = vmatpush.msra.mxu0 %v82
  %128 = vmatpush.msra.mxu0 %v78
  %129 = vmatpush.msra.mxu0 %v74
  %130 = vmatpush.msra.mxu0 %v70
  %131 = vmatpush.msra.mxu0 %v66
  %132 = vmatpush.msra.mxu0 %v62
  %133 = vmatpush.msra.mxu0 %v58
  %134 = vmatpush.msra.mxu0 %v54
  %135 = vmatpush.msra.mxu0 %v50
  %136 = vmatpush.msra.mxu0 %v46
  %137 = vmatpush.msra.mxu0 %v42
  %138 = vmatpush.msra.mxu0 %v38
  %139 = vmatpush.msra.mxu0 %v34
  %140 = vmatpush.msra.mxu0 %v30
  %141 = vmatpush.msra.mxu0 %v26
  %142 = vmatpush.msra.mxu0 %v22
  %143 = vmatmul.f32.gmra.mxu0 %v84
  %v144 = vpop.f32.mrf.mxu0
  %v145 = vadd.f32 0.0, %v144
  %146 = vdwg.mxu0
  %147 = vmatpush.msra.mxu0 %v83
  %148 = vmatpush.msra.mxu0 %v79
  %149 = vmatpush.msra.mxu0 %v75
  %150 = vmatpush.msra.mxu0 %v71
  %151 = vmatpush.msra.mxu0 %v67
  %152 = vmatpush.msra.mxu0 %v63
  %153 = vmatpush.msra.mxu0 %v59
  %154 = vmatpush.msra.mxu0 %v55
  %155 = vmatpush.msra.mxu0 %v51
  %156 = vmatpush.msra.mxu0 %v47
  %157 = vmatpush.msra.mxu0 %v43
  %158 = vmatpush.msra.mxu0 %v39
  %159 = vmatpush.msra.mxu0 %v35
  %160 = vmatpush.msra.mxu0 %v31
  %161 = vmatpush.msra.mxu0 %v27
  %162 = vmatpush.msra.mxu0 %v23
  %163 = vmatmul.f32.gmra.mxu0 %v84
  %v164 = vpop.f32.mrf.mxu0
  %v165 = vadd.f32 0.0, %v164
  %166 = vdwg.mxu0
  %v171 = vrot.slane %v125, 6
  %v172 = vrot.slane %v145, 4
  %v173 = vrot.slane %v165, 2
  %vm174 = vcmask 1041408
  %v175 = vsel %vm174, %v105, %v171
  %vm176 = vcmask 1045508
  %v177 = vsel %vm176, %v172, %v173
  %vm178 = vcmask 1043456
  %v179 = vsel %vm178, %v175, %v177
  %v181 = vadd.f32 %v86, %v179
  %v182 = vxor.u32 %v181, 2147483648
  %v183 = vmul.f32 %v182, 1.442695
  %v184 = vpow.pop %v183
  %v185 = vadd.f32 %v184, 1.0
  %v186 = vrcp.pop %v185
  %v187 = vmul.f32 %v185, %v186
  %v188 = vsub.f32 1.0, %v187
  %v189 = vmul.f32 %v186, %v188
  %v190 = vadd.f32 %v186, %v189
  %vm191 = vweird.f32 %v185
  %vm192 = vweird.f32 %v186
  %vm193 = vmor %vm191, %vm192
  %v194 = vsel %vm193, %v186, %v190
  %v195 = vand.u32 2147483647, %v185
  %vm196 = vcmp.eq.f32.partialorder %v195, 8.507059e+37
  %v197 = vand.u32 %v185, 2147483648
  %v198 = vor.u32 1.1754944e-38, %v197
  %v199 = vsel %vm196, %v198, %v194
  %v200 = vmul.f32 1.0, %v199
  %v202 = vrot.slane %v181, 2
  %v204 = vxor.u32 %v202, 2147483648
  %v205 = vmul.f32 %v204, 1.442695
  %v206 = vpow.pop %v205
  %v207 = vadd.f32 %v206, 1.0
  %v208 = vrcp.pop %v207
  %v209 = vmul.f32 %v207, %v208
  %v210 = vsub.f32 1.0, %v209
  %v211 = vmul.f32 %v208, %v210
  %v212 = vadd.f32 %v208, %v211
  %vm213 = vweird.f32 %v207
  %vm214 = vweird.f32 %v208
  %vm215 = vmor %vm213, %vm214
  %v216 = vsel %vm215, %v208, %v212
  %v217 = vand.u32 2147483647, %v207
  %vm218 = vcmp.eq.f32.partialorder %v217, 8.507059e+37
  %v219 = vand.u32 %v207, 2147483648
  %v220 = vor.u32 1.1754944e-38, %v219
  %v221 = vsel %vm218, %v220, %v216
  %v222 = vmul.f32 1.0, %v221
  %v223 = vrot.slane %v181, 4
  %v225 = vtanh.pop %v223
  %v226 = vrot.slane %v181, 6
  %v228 = vxor.u32 %v226, 2147483648
  %v229 = vmul.f32 %v228, 1.442695
  %v230 = vpow.pop %v229
  %v231 = vadd.f32 %v230, 1.0
  %v232 = vrcp.pop %v231
  %v233 = vmul.f32 %v231, %v232
  %v234 = vsub.f32 1.0, %v233
  %v235 = vmul.f32 %v232, %v234
  %v236 = vadd.f32 %v232, %v235
  %vm237 = vweird.f32 %v231
  %vm238 = vweird.f32 %v232
  %vm239 = vmor %vm237, %vm238
  %v240 = vsel %vm239, %v232, %v236
  %v241 = vand.u32 2147483647, %v231
  %vm242 = vcmp.eq.f32.partialorder %v241, 8.507059e+37
  %v243 = vand.u32 %v231, 2147483648
  %v244 = vor.u32 1.1754944e-38, %v243
  %v245 = vsel %vm242, %v244, %v240
  %v246 = vmul.f32 1.0, %v245
  %v247 = vmul.f32 %v222, %v85
  %v248 = vmul.f32 %v200, %v225
  %v249 = vadd.f32 %v247, %v248
  %v250 = vtanh.pop %v249
  %v251 = vmul.f32 %v246, %v250
  %252 = vst [vmem:[%s4] sm:$0x3] %v251
  %s253 = scalar_lea.vmem %s0, 8
  %v254 = vld [vmem:[%s253] sm:$0xff]
  %255 = vmatpush.msra.mxu0 %v80
  %256 = vmatpush.msra.mxu0 %v76
  %257 = vmatpush.msra.mxu0 %v72
  %258 = vmatpush.msra.mxu0 %v68
  %259 = vmatpush.msra.mxu0 %v64
  %260 = vmatpush.msra.mxu0 %v60
  %261 = vmatpush.msra.mxu0 %v56
  %262 = vmatpush.msra.mxu0 %v52
  %263 = vmatpush.msra.mxu0 %v48
  %264 = vmatpush.msra.mxu0 %v44
  %265 = vmatpush.msra.mxu0 %v40
  %266 = vmatpush.msra.mxu0 %v36
  %267 = vmatpush.msra.mxu0 %v32
  %268 = vmatpush.msra.mxu0 %v28
  %269 = vmatpush.msra.mxu0 %v24
  %270 = vmatpush.msra.mxu0 %v20
  %271 = vmatmul.f32.gmra.mxu0 %v251
  %v272 = vpop.f32.mrf.mxu0
  %v273 = vadd.f32 0.0, %v272
  %274 = vdwg.mxu0
  %275 = vmatpush.msra.mxu0 %v81
  %276 = vmatpush.msra.mxu0 %v77
  %277 = vmatpush.msra.mxu0 %v73
  %278 = vmatpush.msra.mxu0 %v69
  %279 = vmatpush.msra.mxu0 %v65
  %280 = vmatpush.msra.mxu0 %v61
  %281 = vmatpush.msra.mxu0 %v57
  %282 = vmatpush.msra.mxu0 %v53
  %283 = vmatpush.msra.mxu0 %v49
  %284 = vmatpush.msra.mxu0 %v45
  %285 = vmatpush.msra.mxu0 %v41
  %286 = vmatpush.msra.mxu0 %v37
  %287 = vmatpush.msra.mxu0 %v33
  %288 = vmatpush.msra.mxu0 %v29
  %289 = vmatpush.msra.mxu0 %v25
  %290 = vmatpush.msra.mxu0 %v21
  %291 = vmatmul.f32.gmra.mxu0 %v251
  %v292 = vpop.f32.mrf.mxu0
  %v293 = vadd.f32 0.0, %v292
  %294 = vdwg.mxu0
  %295 = vmatpush.msra.mxu0 %v82
  %296 = vmatpush.msra.mxu0 %v78
  %297 = vmatpush.msra.mxu0 %v74
  %298 = vmatpush.msra.mxu0 %v70
  %299 = vmatpush.msra.mxu0 %v66
  %300 = vmatpush.msra.mxu0 %v62
  %301 = vmatpush.msra.mxu0 %v58
  %302 = vmatpush.msra.mxu0 %v54
  %303 = vmatpush.msra.mxu0 %v50
  %304 = vmatpush.msra.mxu0 %v46
  %305 = vmatpush.msra.mxu0 %v42
  %306 = vmatpush.msra.mxu0 %v38
  %307 = vmatpush.msra.mxu0 %v34
  %308 = vmatpush.msra.mxu0 %v30
  %309 = vmatpush.msra.mxu0 %v26
  %310 = vmatpush.msra.mxu0 %v22
  %311 = vmatmul.f32.gmra.mxu0 %v251
  %v312 = vpop.f32.mrf.mxu0
  %v313 = vadd.f32 0.0, %v312
  %314 = vdwg.mxu0
  %315 = vmatpush.msra.mxu0 %v83
  %316 = vmatpush.msra.mxu0 %v79
  %317 = vmatpush.msra.mxu0 %v75
  %318 = vmatpush.msra.mxu0 %v71
  %319 = vmatpush.msra.mxu0 %v67
  %320 = vmatpush.msra.mxu0 %v63
  %321 = vmatpush.msra.mxu0 %v59
  %322 = vmatpush.msra.mxu0 %v55
  %323 = vmatpush.msra.mxu0 %v51
  %324 = vmatpush.msra.mxu0 %v47
  %325 = vmatpush.msra.mxu0 %v43
  %326 = vmatpush.msra.mxu0 %v39
  %327 = vmatpush.msra.mxu0 %v35
  %328 = vmatpush.msra.mxu0 %v31
  %329 = vmatpush.msra.mxu0 %v27
  %330 = vmatpush.msra.mxu0 %v23
  %331 = vmatmul.f32.gmra.mxu0 %v251
  %v332 = vpop.f32.mrf.mxu0
  %v333 = vadd.f32 0.0, %v332
  %334 = vdwg.mxu0
  %v339 = vrot.slane %v293, 6
  %v340 = vrot.slane %v313, 4
  %v341 = vrot.slane %v333, 2
  %v342 = vsel %vm174, %v273, %v339
  %v343 = vsel %vm176, %v340, %v341
  %v344 = vsel %vm178, %v342, %v343
  %v346 = vadd.f32 %v254, %v344
  %v347 = vxor.u32 %v346, 2147483648
  %v348 = vmul.f32 %v347, 1.442695
  %v349 = vpow.pop %v348
  %v350 = vadd.f32 %v349, 1.0
  %v351 = vrcp.pop %v350
  %v352 = vmul.f32 %v350, %v351
  %v353 = vsub.f32 1.0, %v352
  %v354 = vmul.f32 %v351, %v353
  %v355 = vadd.f32 %v351, %v354
  %vm356 = vweird.f32 %v350
  %vm357 = vweird.f32 %v351
  %vm358 = vmor %vm356, %vm357
  %v359 = vsel %vm358, %v351, %v355
  %v360 = vand.u32 2147483647, %v350
  %vm361 = vcmp.eq.f32.partialorder %v360, 8.507059e+37
  %v362 = vand.u32 %v350, 2147483648
  %v363 = vor.u32 1.1754944e-38, %v362
  %v364 = vsel %vm361, %v363, %v359
  %v365 = vmul.f32 1.0, %v364
  %v367 = vrot.slane %v346, 2
  %v369 = vxor.u32 %v367, 2147483648
  %v370 = vmul.f32 %v369, 1.442695
  %v371 = vpow.pop %v370
  %v372 = vadd.f32 %v371, 1.0
  %v373 = vrcp.pop %v372
  %v374 = vmul.f32 %v372, %v373
  %v375 = vsub.f32 1.0, %v374
  %v376 = vmul.f32 %v373, %v375
  %v377 = vadd.f32 %v373, %v376
  %vm378 = vweird.f32 %v372
  %vm379 = vweird.f32 %v373
  %vm380 = vmor %vm378, %vm379
  %v381 = vsel %vm380, %v373, %v377
  %v382 = vand.u32 2147483647, %v372
  %vm383 = vcmp.eq.f32.partialorder %v382, 8.507059e+37
  %v384 = vand.u32 %v372, 2147483648
  %v385 = vor.u32 1.1754944e-38, %v384
  %v386 = vsel %vm383, %v385, %v381
  %v387 = vmul.f32 1.0, %v386
  %v388 = vrot.slane %v346, 4
  %v390 = vtanh.pop %v388
  %v391 = vrot.slane %v346, 6
  %v393 = vxor.u32 %v391, 2147483648
  %v394 = vmul.f32 %v393, 1.442695
  %v395 = vpow.pop %v394
  %v396 = vadd.f32 %v395, 1.0
  %v397 = vrcp.pop %v396
  %v398 = vmul.f32 %v396, %v397
  %v399 = vsub.f32 1.0, %v398
  %v400 = vmul.f32 %v397, %v399
  %v401 = vadd.f32 %v397, %v400
  %vm402 = vweird.f32 %v396
  %vm403 = vweird.f32 %v397
  %vm404 = vmor %vm402, %vm403
  %v405 = vsel %vm404, %v397, %v401
  %v406 = vand.u32 2147483647, %v396
  %vm407 = vcmp.eq.f32.partialorder %v406, 8.507059e+37
  %v408 = vand.u32 %v396, 2147483648
  %v409 = vor.u32 1.1754944e-38, %v408
  %v410 = vsel %vm407, %v409, %v405
  %v411 = vmul.f32 1.0, %v410
  %v412 = vmul.f32 %v387, %v249
  %v413 = vmul.f32 %v365, %v390
  %v414 = vadd.f32 %v412, %v413
  %v415 = vtanh.pop %v414
  %v416 = vmul.f32 %v411, %v415
  %s417 = scalar_lea.vmem %s4, 2
  %418 = vst [vmem:[%s417] sm:$0x3] %v416
  %s419 = scalar_lea.vmem %s0, 16
  %v420 = vld [vmem:[%s419] sm:$0xff]
  %421 = vmatpush.msra.mxu0 %v80
  %422 = vmatpush.msra.mxu0 %v76
  %423 = vmatpush.msra.mxu0 %v72
  %424 = vmatpush.msra.mxu0 %v68
  %425 = vmatpush.msra.mxu0 %v64
  %426 = vmatpush.msra.mxu0 %v60
  %427 = vmatpush.msra.mxu0 %v56
  %428 = vmatpush.msra.mxu0 %v52
  %429 = vmatpush.msra.mxu0 %v48
  %430 = vmatpush.msra.mxu0 %v44
  %431 = vmatpush.msra.mxu0 %v40
  %432 = vmatpush.msra.mxu0 %v36
  %433 = vmatpush.msra.mxu0 %v32
  %434 = vmatpush.msra.mxu0 %v28
  %435 = vmatpush.msra.mxu0 %v24
  %436 = vmatpush.msra.mxu0 %v20
  %437 = vmatmul.f32.gmra.mxu0 %v416
  %v438 = vpop.f32.mrf.mxu0
  %v439 = vadd.f32 0.0, %v438
  %440 = vdwg.mxu0
  %441 = vmatpush.msra.mxu0 %v81
  %442 = vmatpush.msra.mxu0 %v77
  %443 = vmatpush.msra.mxu0 %v73
  %444 = vmatpush.msra.mxu0 %v69
  %445 = vmatpush.msra.mxu0 %v65
  %446 = vmatpush.msra.mxu0 %v61
  %447 = vmatpush.msra.mxu0 %v57
  %448 = vmatpush.msra.mxu0 %v53
  %449 = vmatpush.msra.mxu0 %v49
  %450 = vmatpush.msra.mxu0 %v45
  %451 = vmatpush.msra.mxu0 %v41
  %452 = vmatpush.msra.mxu0 %v37
  %453 = vmatpush.msra.mxu0 %v33
  %454 = vmatpush.msra.mxu0 %v29
  %455 = vmatpush.msra.mxu0 %v25
  %456 = vmatpush.msra.mxu0 %v21
  %457 = vmatmul.f32.gmra.mxu0 %v416
  %v458 = vpop.f32.mrf.mxu0
  %v459 = vadd.f32 0.0, %v458
  %460 = vdwg.mxu0
  %461 = vmatpush.msra.mxu0 %v82
  %462 = vmatpush.msra.mxu0 %v78
  %463 = vmatpush.msra.mxu0 %v74
  %464 = vmatpush.msra.mxu0 %v70
  %465 = vmatpush.msra.mxu0 %v66
  %466 = vmatpush.msra.mxu0 %v62
  %467 = vmatpush.msra.mxu0 %v58
  %468 = vmatpush.msra.mxu0 %v54
  %469 = vmatpush.msra.mxu0 %v50
  %470 = vmatpush.msra.mxu0 %v46
  %471 = vmatpush.msra.mxu0 %v42
  %472 = vmatpush.msra.mxu0 %v38
  %473 = vmatpush.msra.mxu0 %v34
  %474 = vmatpush.msra.mxu0 %v30
  %475 = vmatpush.msra.mxu0 %v26
  %476 = vmatpush.msra.mxu0 %v22
  %477 = vmatmul.f32.gmra.mxu0 %v416
  %v478 = vpop.f32.mrf.mxu0
  %v479 = vadd.f32 0.0, %v478
  %480 = vdwg.mxu0
  %481 = vmatpush.msra.mxu0 %v83
  %482 = vmatpush.msra.mxu0 %v79
  %483 = vmatpush.msra.mxu0 %v75
  %484 = vmatpush.msra.mxu0 %v71
  %485 = vmatpush.msra.mxu0 %v67
  %486 = vmatpush.msra.mxu0 %v63
  %487 = vmatpush.msra.mxu0 %v59
  %488 = vmatpush.msra.mxu0 %v55
  %489 = vmatpush.msra.mxu0 %v51
  %490 = vmatpush.msra.mxu0 %v47
  %491 = vmatpush.msra.mxu0 %v43
  %492 = vmatpush.msra.mxu0 %v39
  %493 = vmatpush.msra.mxu0 %v35
  %494 = vmatpush.msra.mxu0 %v31
  %495 = vmatpush.msra.mxu0 %v27
  %496 = vmatpush.msra.mxu0 %v23
  %497 = vmatmul.f32.gmra.mxu0 %v416
  %v498 = vpop.f32.mrf.mxu0
  %v499 = vadd.f32 0.0, %v498
  %500 = vdwg.mxu0
  %v505 = vrot.slane %v459, 6
  %v506 = vrot.slane %v479, 4
  %v507 = vrot.slane %v499, 2
  %v508 = vsel %vm174, %v439, %v505
  %v509 = vsel %vm176, %v506, %v507
  %v510 = vsel %vm178, %v508, %v509
  %v512 = vadd.f32 %v420, %v510
  %v513 = vxor.u32 %v512, 2147483648
  %v514 = vmul.f32 %v513, 1.442695
  %v515 = vpow.pop %v514
  %v516 = vadd.f32 %v515, 1.0
  %v517 = vrcp.pop %v516
  %v518 = vmul.f32 %v516, %v517
  %v519 = vsub.f32 1.0, %v518
  %v520 = vmul.f32 %v517, %v519
  %v521 = vadd.f32 %v517, %v520
  %vm522 = vweird.f32 %v516
  %vm523 = vweird.f32 %v517
  %vm524 = vmor %vm522, %vm523
  %v525 = vsel %vm524, %v517, %v521
  %v526 = vand.u32 2147483647, %v516
  %vm527 = vcmp.eq.f32.partialorder %v526, 8.507059e+37
  %v528 = vand.u32 %v516, 2147483648
  %v529 = vor.u32 1.1754944e-38, %v528
  %v530 = vsel %vm527, %v529, %v525
  %v531 = vmul.f32 1.0, %v530
  %v533 = vrot.slane %v512, 2
  %v535 = vxor.u32 %v533, 2147483648
  %v536 = vmul.f32 %v535, 1.442695
  %v537 = vpow.pop %v536
  %v538 = vadd.f32 %v537, 1.0
  %v539 = vrcp.pop %v538
  %v540 = vmul.f32 %v538, %v539
  %v541 = vsub.f32 1.0, %v540
  %v542 = vmul.f32 %v539, %v541
  %v543 = vadd.f32 %v539, %v542
  %vm544 = vweird.f32 %v538
  %vm545 = vweird.f32 %v539
  %vm546 = vmor %vm544, %vm545
  %v547 = vsel %vm546, %v539, %v543
  %v548 = vand.u32 2147483647, %v538
  %vm549 = vcmp.eq.f32.partialorder %v548, 8.507059e+37
  %v550 = vand.u32 %v538, 2147483648
  %v551 = vor.u32 1.1754944e-38, %v550
  %v552 = vsel %vm549, %v551, %v547
  %v553 = vmul.f32 1.0, %v552
  %v554 = vrot.slane %v512, 4
  %v556 = vtanh.pop %v554
  %v557 = vrot.slane %v512, 6
  %v559 = vxor.u32 %v557, 2147483648
  %v560 = vmul.f32 %v559, 1.442695
  %v561 = vpow.pop %v560
  %v562 = vadd.f32 %v561, 1.0
  %v563 = vrcp.pop %v562
  %v564 = vmul.f32 %v562, %v563
  %v565 = vsub.f32 1.0, %v564
  %v566 = vmul.f32 %v563, %v565
  %v567 = vadd.f32 %v563, %v566
  %vm568 = vweird.f32 %v562
  %vm569 = vweird.f32 %v563
  %vm570 = vmor %vm568, %vm569
  %v571 = vsel %vm570, %v563, %v567
  %v572 = vand.u32 2147483647, %v562
  %vm573 = vcmp.eq.f32.partialorder %v572, 8.507059e+37
  %v574 = vand.u32 %v562, 2147483648
  %v575 = vor.u32 1.1754944e-38, %v574
  %v576 = vsel %vm573, %v575, %v571
  %v577 = vmul.f32 1.0, %v576
  %v578 = vmul.f32 %v553, %v414
  %v579 = vmul.f32 %v531, %v556
  %v580 = vadd.f32 %v578, %v579
  %v581 = vtanh.pop %v580
  %v582 = vmul.f32 %v577, %v581
  %s583 = scalar_lea.vmem %s4, 4
  %584 = vst [vmem:[%s583] sm:$0x3] %v582
  %s585 = scalar_lea.vmem %s0, 24
  %v586 = vld [vmem:[%s585] sm:$0xff]
  %587 = vmatpush.msra.mxu0 %v80
  %588 = vmatpush.msra.mxu0 %v76
  %589 = vmatpush.msra.mxu0 %v72
  %590 = vmatpush.msra.mxu0 %v68
  %591 = vmatpush.msra.mxu0 %v64
  %592 = vmatpush.msra.mxu0 %v60
  %593 = vmatpush.msra.mxu0 %v56
  %594 = vmatpush.msra.mxu0 %v52
  %595 = vmatpush.msra.mxu0 %v48
  %596 = vmatpush.msra.mxu0 %v44
  %597 = vmatpush.msra.mxu0 %v40
  %598 = vmatpush.msra.mxu0 %v36
  %599 = vmatpush.msra.mxu0 %v32
  %600 = vmatpush.msra.mxu0 %v28
  %601 = vmatpush.msra.mxu0 %v24
  %602 = vmatpush.msra.mxu0 %v20
  %603 = vmatmul.f32.gmra.mxu0 %v582
  %v604 = vpop.f32.mrf.mxu0
  %v605 = vadd.f32 0.0, %v604
  %606 = vdwg.mxu0
  %607 = vmatpush.msra.mxu0 %v81
  %608 = vmatpush.msra.mxu0 %v77
  %609 = vmatpush.msra.mxu0 %v73
  %610 = vmatpush.msra.mxu0 %v69
  %611 = vmatpush.msra.mxu0 %v65
  %612 = vmatpush.msra.mxu0 %v61
  %613 = vmatpush.msra.mxu0 %v57
  %614 = vmatpush.msra.mxu0 %v53
  %615 = vmatpush.msra.mxu0 %v49
  %616 = vmatpush.msra.mxu0 %v45
  %617 = vmatpush.msra.mxu0 %v41
  %618 = vmatpush.msra.mxu0 %v37
  %619 = vmatpush.msra.mxu0 %v33
  %620 = vmatpush.msra.mxu0 %v29
  %621 = vmatpush.msra.mxu0 %v25
  %622 = vmatpush.msra.mxu0 %v21
  %623 = vmatmul.f32.gmra.mxu0 %v582
  %v624 = vpop.f32.mrf.mxu0
  %v625 = vadd.f32 0.0, %v624
  %626 = vdwg.mxu0
  %627 = vmatpush.msra.mxu0 %v82
  %628 = vmatpush.msra.mxu0 %v78
  %629 = vmatpush.msra.mxu0 %v74
  %630 = vmatpush.msra.mxu0 %v70
  %631 = vmatpush.msra.mxu0 %v66
  %632 = vmatpush.msra.mxu0 %v62
  %633 = vmatpush.msra.mxu0 %v58
  %634 = vmatpush.msra.mxu0 %v54
  %635 = vmatpush.msra.mxu0 %v50
  %636 = vmatpush.msra.mxu0 %v46
  %637 = vmatpush.msra.mxu0 %v42
  %638 = vmatpush.msra.mxu0 %v38
  %639 = vmatpush.msra.mxu0 %v34
  %640 = vmatpush.msra.mxu0 %v30
  %641 = vmatpush.msra.mxu0 %v26
  %642 = vmatpush.msra.mxu0 %v22
  %643 = vmatmul.f32.gmra.mxu0 %v582
  %v644 = vpop.f32.mrf.mxu0
  %v645 = vadd.f32 0.0, %v644
  %646 = vdwg.mxu0
  %647 = vmatpush.msra.mxu0 %v83
  %648 = vmatpush.msra.mxu0 %v79
  %649 = vmatpush.msra.mxu0 %v75
  %650 = vmatpush.msra.mxu0 %v71
  %651 = vmatpush.msra.mxu0 %v67
  %652 = vmatpush.msra.mxu0 %v63
  %653 = vmatpush.msra.mxu0 %v59
  %654 = vmatpush.msra.mxu0 %v55
  %655 = vmatpush.msra.mxu0 %v51
  %656 = vmatpush.msra.mxu0 %v47
  %657 = vmatpush.msra.mxu0 %v43
  %658 = vmatpush.msra.mxu0 %v39
  %659 = vmatpush.msra.mxu0 %v35
  %660 = vmatpush.msra.mxu0 %v31
  %661 = vmatpush.msra.mxu0 %v27
  %662 = vmatpush.msra.mxu0 %v23
  %663 = vmatmul.f32.gmra.mxu0 %v582
  %v664 = vpop.f32.mrf.mxu0
  %v665 = vadd.f32 0.0, %v664
  %666 = vdwg.mxu0
  %v671 = vrot.slane %v625, 6
  %v672 = vrot.slane %v645, 4
  %v673 = vrot.slane %v665, 2
  %v674 = vsel %vm174, %v605, %v671
  %v675 = vsel %vm176, %v672, %v673
  %v676 = vsel %vm178, %v674, %v675
  %v678 = vadd.f32 %v586, %v676
  %v679 = vxor.u32 %v678, 2147483648
  %v680 = vmul.f32 %v679, 1.442695
  %v681 = vpow.pop %v680
  %v682 = vadd.f32 %v681, 1.0
  %v683 = vrcp.pop %v682
  %v684 = vmul.f32 %v682, %v683
  %v685 = vsub.f32 1.0, %v684
  %v686 = vmul.f32 %v683, %v685
  %v687 = vadd.f32 %v683, %v686
  %vm688 = vweird.f32 %v682
  %vm689 = vweird.f32 %v683
  %vm690 = vmor %vm688, %vm689
  %v691 = vsel %vm690, %v683, %v687
  %v692 = vand.u32 2147483647, %v682
  %vm693 = vcmp.eq.f32.partialorder %v692, 8.507059e+37
  %v694 = vand.u32 %v682, 2147483648
  %v695 = vor.u32 1.1754944e-38, %v694
  %v696 = vsel %vm693, %v695, %v691
  %v697 = vmul.f32 1.0, %v696
  %v699 = vrot.slane %v678, 2
  %v701 = vxor.u32 %v699, 2147483648
  %v702 = vmul.f32 %v701, 1.442695
  %v703 = vpow.pop %v702
  %v704 = vadd.f32 %v703, 1.0
  %v705 = vrcp.pop %v704
  %v706 = vmul.f32 %v704, %v705
  %v707 = vsub.f32 1.0, %v706
  %v708 = vmul.f32 %v705, %v707
  %v709 = vadd.f32 %v705, %v708
  %vm710 = vweird.f32 %v704
  %vm711 = vweird.f32 %v705
  %vm712 = vmor %vm710, %vm711
  %v713 = vsel %vm712, %v705, %v709
  %v714 = vand.u32 2147483647, %v704
  %vm715 = vcmp.eq.f32.partialorder %v714, 8.507059e+37
  %v716 = vand.u32 %v704, 2147483648
  %v717 = vor.u32 1.1754944e-38, %v716
  %v718 = vsel %vm715, %v717, %v713
  %v719 = vmul.f32 1.0, %v718
  %v720 = vrot.slane %v678, 4
  %v722 = vtanh.pop %v720
  %v723 = vrot.slane %v678, 6
  %v725 = vxor.u32 %v723, 2147483648
  %v726 = vmul.f32 %v725, 1.442695
  %v727 = vpow.pop %v726
  %v728 = vadd.f32 %v727, 1.0
  %v729 = vrcp.pop %v728
  %v730 = vmul.f32 %v728, %v729
  %v731 = vsub.f32 1.0, %v730
  %v732 = vmul.f32 %v729, %v731
  %v733 = vadd.f32 %v729, %v732
  %vm734 = vweird.f32 %v728
  %vm735 = vweird.f32 %v729
  %vm736 = vmor %vm734, %vm735
  %v737 = vsel %vm736, %v729, %v733
  %v738 = vand.u32 2147483647, %v728
  %vm739 = vcmp.eq.f32.partialorder %v738, 8.507059e+37
  %v740 = vand.u32 %v728, 2147483648
  %v741 = vor.u32 1.1754944e-38, %v740
  %v742 = vsel %vm739, %v741, %v737
  %v743 = vmul.f32 1.0, %v742
  %v744 = vmul.f32 %v719, %v580
  %v745 = vmul.f32 %v697, %v722
  %v746 = vadd.f32 %v744, %v745
  %v747 = vtanh.pop %v746
  %v748 = vmul.f32 %v743, %v747
  %s749 = scalar_lea.vmem %s4, 6
  %750 = vst [vmem:[%s749] sm:$0x3] %v748
  %s751 = scalar_lea.vmem %s0, 32
  %v752 = vld [vmem:[%s751] sm:$0xff]
  %753 = vmatpush.msra.mxu0 %v80
  %754 = vmatpush.msra.mxu0 %v76
  %755 = vmatpush.msra.mxu0 %v72
  %756 = vmatpush.msra.mxu0 %v68
  %757 = vmatpush.msra.mxu0 %v64
  %758 = vmatpush.msra.mxu0 %v60
  %759 = vmatpush.msra.mxu0 %v56
  %760 = vmatpush.msra.mxu0 %v52
  %761 = vmatpush.msra.mxu0 %v48
  %762 = vmatpush.msra.mxu0 %v44
  %763 = vmatpush.msra.mxu0 %v40
  %764 = vmatpush.msra.mxu0 %v36
  %765 = vmatpush.msra.mxu0 %v32
  %766 = vmatpush.msra.mxu0 %v28
  %767 = vmatpush.msra.mxu0 %v24
  %768 = vmatpush.msra.mxu0 %v20
  %769 = vmatmul.f32.gmra.mxu0 %v748
  %v770 = vpop.f32.mrf.mxu0
  %v771 = vadd.f32 0.0, %v770
  %772 = vdwg.mxu0
  %773 = vmatpush.msra.mxu0 %v81
  %774 = vmatpush.msra.mxu0 %v77
  %775 = vmatpush.msra.mxu0 %v73
  %776 = vmatpush.msra.mxu0 %v69
  %777 = vmatpush.msra.mxu0 %v65
  %778 = vmatpush.msra.mxu0 %v61
  %779 = vmatpush.msra.mxu0 %v57
  %780 = vmatpush.msra.mxu0 %v53
  %781 = vmatpush.msra.mxu0 %v49
  %782 = vmatpush.msra.mxu0 %v45
  %783 = vmatpush.msra.mxu0 %v41
  %784 = vmatpush.msra.mxu0 %v37
  %785 = vmatpush.msra.mxu0 %v33
  %786 = vmatpush.msra.mxu0 %v29
  %787 = vmatpush.msra.mxu0 %v25
  %788 = vmatpush.msra.mxu0 %v21
  %789 = vmatmul.f32.gmra.mxu0 %v748
  %v790 = vpop.f32.mrf.mxu0
  %v791 = vadd.f32 0.0, %v790
  %792 = vdwg.mxu0
  %793 = vmatpush.msra.mxu0 %v82
  %794 = vmatpush.msra.mxu0 %v78
  %795 = vmatpush.msra.mxu0 %v74
  %796 = vmatpush.msra.mxu0 %v70
  %797 = vmatpush.msra.mxu0 %v66
  %798 = vmatpush.msra.mxu0 %v62
  %799 = vmatpush.msra.mxu0 %v58
  %800 = vmatpush.msra.mxu0 %v54
  %801 = vmatpush.msra.mxu0 %v50
  %802 = vmatpush.msra.mxu0 %v46
  %803 = vmatpush.msra.mxu0 %v42
  %804 = vmatpush.msra.mxu0 %v38
  %805 = vmatpush.msra.mxu0 %v34
  %806 = vmatpush.msra.mxu0 %v30
  %807 = vmatpush.msra.mxu0 %v26
  %808 = vmatpush.msra.mxu0 %v22
  %809 = vmatmul.f32.gmra.mxu0 %v748
  %v810 = vpop.f32.mrf.mxu0
  %v811 = vadd.f32 0.0, %v810
  %812 = vdwg.mxu0
  %813 = vmatpush.msra.mxu0 %v83
  %814 = vmatpush.msra.mxu0 %v79
  %815 = vmatpush.msra.mxu0 %v75
  %816 = vmatpush.msra.mxu0 %v71
  %817 = vmatpush.msra.mxu0 %v67
  %818 = vmatpush.msra.mxu0 %v63
  %819 = vmatpush.msra.mxu0 %v59
  %820 = vmatpush.msra.mxu0 %v55
  %821 = vmatpush.msra.mxu0 %v51
  %822 = vmatpush.msra.mxu0 %v47
  %823 = vmatpush.msra.mxu0 %v43
  %824 = vmatpush.msra.mxu0 %v39
  %825 = vmatpush.msra.mxu0 %v35
  %826 = vmatpush.msra.mxu0 %v31
  %827 = vmatpush.msra.mxu0 %v27
  %828 = vmatpush.msra.mxu0 %v23
  %829 = vmatmul.f32.gmra.mxu0 %v748
  %v830 = vpop.f32.mrf.mxu0
  %v831 = vadd.f32 0.0, %v830
  %832 = vdwg.mxu0
  %v837 = vrot.slane %v791, 6
  %v838 = vrot.slane %v811, 4
  %v839 = vrot.slane %v831, 2
  %v840 = vsel %vm174, %v771, %v837
  %v841 = vsel %vm176, %v838, %v839
  %v842 = vsel %vm178, %v840, %v841
  %v844 = vadd.f32 %v752, %v842
  %v845 = vxor.u32 %v844, 2147483648
  %v846 = vmul.f32 %v845, 1.442695
  %v847 = vpow.pop %v846
  %v848 = vadd.f32 %v847, 1.0
  %v849 = vrcp.pop %v848
  %v850 = vmul.f32 %v848, %v849
  %v851 = vsub.f32 1.0, %v850
  %v852 = vmul.f32 %v849, %v851
  %v853 = vadd.f32 %v849, %v852
  %vm854 = vweird.f32 %v848
  %vm855 = vweird.f32 %v849
  %vm856 = vmor %vm854, %vm855
  %v857 = vsel %vm856, %v849, %v853
  %v858 = vand.u32 2147483647, %v848
  %vm859 = vcmp.eq.f32.partialorder %v858, 8.507059e+37
  %v860 = vand.u32 %v848, 2147483648
  %v861 = vor.u32 1.1754944e-38, %v860
  %v862 = vsel %vm859, %v861, %v857
  %v863 = vmul.f32 1.0, %v862
  %v865 = vrot.slane %v844, 2
  %v867 = vxor.u32 %v865, 2147483648
  %v868 = vmul.f32 %v867, 1.442695
  %v869 = vpow.pop %v868
  %v870 = vadd.f32 %v869, 1.0
  %v871 = vrcp.pop %v870
  %v872 = vmul.f32 %v870, %v871
  %v873 = vsub.f32 1.0, %v872
  %v874 = vmul.f32 %v871, %v873
  %v875 = vadd.f32 %v871, %v874
  %vm876 = vweird.f32 %v870
  %vm877 = vweird.f32 %v871
  %vm878 = vmor %vm876, %vm877
  %v879 = vsel %vm878, %v871, %v875
  %v880 = vand.u32 2147483647, %v870
  %vm881 = vcmp.eq.f32.partialorder %v880, 8.507059e+37
  %v882 = vand.u32 %v870, 2147483648
  %v883 = vor.u32 1.1754944e-38, %v882
  %v884 = vsel %vm881, %v883, %v879
  %v885 = vmul.f32 1.0, %v884
  %v886 = vrot.slane %v844, 4
  %v888 = vtanh.pop %v886
  %v889 = vrot.slane %v844, 6
  %v891 = vxor.u32 %v889, 2147483648
  %v892 = vmul.f32 %v891, 1.442695
  %v893 = vpow.pop %v892
  %v894 = vadd.f32 %v893, 1.0
  %v895 = vrcp.pop %v894
  %v896 = vmul.f32 %v894, %v895
  %v897 = vsub.f32 1.0, %v896
  %v898 = vmul.f32 %v895, %v897
  %v899 = vadd.f32 %v895, %v898
  %vm900 = vweird.f32 %v894
  %vm901 = vweird.f32 %v895
  %vm902 = vmor %vm900, %vm901
  %v903 = vsel %vm902, %v895, %v899
  %v904 = vand.u32 2147483647, %v894
  %vm905 = vcmp.eq.f32.partialorder %v904, 8.507059e+37
  %v906 = vand.u32 %v894, 2147483648
  %v907 = vor.u32 1.1754944e-38, %v906
  %v908 = vsel %vm905, %v907, %v903
  %v909 = vmul.f32 1.0, %v908
  %v910 = vmul.f32 %v885, %v746
  %v911 = vmul.f32 %v863, %v888
  %v912 = vadd.f32 %v910, %v911
  %v913 = vtanh.pop %v912
  %v914 = vmul.f32 %v909, %v913
  %s915 = scalar_lea.vmem %s4, 8
  %916 = vst [vmem:[%s915] sm:$0x3] %v914
  %s917 = scalar_lea.vmem %s0, 40
  %v918 = vld [vmem:[%s917] sm:$0xff]
  %919 = vmatpush.msra.mxu0 %v80
  %920 = vmatpush.msra.mxu0 %v76
  %921 = vmatpush.msra.mxu0 %v72
  %922 = vmatpush.msra.mxu0 %v68
  %923 = vmatpush.msra.mxu0 %v64
  %924 = vmatpush.msra.mxu0 %v60
  %925 = vmatpush.msra.mxu0 %v56
  %926 = vmatpush.msra.mxu0 %v52
  %927 = vmatpush.msra.mxu0 %v48
  %928 = vmatpush.msra.mxu0 %v44
  %929 = vmatpush.msra.mxu0 %v40
  %930 = vmatpush.msra.mxu0 %v36
  %931 = vmatpush.msra.mxu0 %v32
  %932 = vmatpush.msra.mxu0 %v28
  %933 = vmatpush.msra.mxu0 %v24
  %934 = vmatpush.msra.mxu0 %v20
  %935 = vmatmul.f32.gmra.mxu0 %v914
  %v936 = vpop.f32.mrf.mxu0
  %v937 = vadd.f32 0.0, %v936
  %938 = vdwg.mxu0
  %939 = vmatpush.msra.mxu0 %v81
  %940 = vmatpush.msra.mxu0 %v77
  %941 = vmatpush.msra.mxu0 %v73
  %942 = vmatpush.msra.mxu0 %v69
  %943 = vmatpush.msra.mxu0 %v65
  %944 = vmatpush.msra.mxu0 %v61
  %945 = vmatpush.msra.mxu0 %v57
  %946 = vmatpush.msra.mxu0 %v53
  %947 = vmatpush.msra.mxu0 %v49
  %948 = vmatpush.msra.mxu0 %v45
  %949 = vmatpush.msra.mxu0 %v41
  %950 = vmatpush.msra.mxu0 %v37
  %951 = vmatpush.msra.mxu0 %v33
  %952 = vmatpush.msra.mxu0 %v29
  %953 = vmatpush.msra.mxu0 %v25
  %954 = vmatpush.msra.mxu0 %v21
  %955 = vmatmul.f32.gmra.mxu0 %v914
  %v956 = vpop.f32.mrf.mxu0
  %v957 = vadd.f32 0.0, %v956
  %958 = vdwg.mxu0
  %959 = vmatpush.msra.mxu0 %v82
  %960 = vmatpush.msra.mxu0 %v78
  %961 = vmatpush.msra.mxu0 %v74
  %962 = vmatpush.msra.mxu0 %v70
  %963 = vmatpush.msra.mxu0 %v66
  %964 = vmatpush.msra.mxu0 %v62
  %965 = vmatpush.msra.mxu0 %v58
  %966 = vmatpush.msra.mxu0 %v54
  %967 = vmatpush.msra.mxu0 %v50
  %968 = vmatpush.msra.mxu0 %v46
  %969 = vmatpush.msra.mxu0 %v42
  %970 = vmatpush.msra.mxu0 %v38
  %971 = vmatpush.msra.mxu0 %v34
  %972 = vmatpush.msra.mxu0 %v30
  %973 = vmatpush.msra.mxu0 %v26
  %974 = vmatpush.msra.mxu0 %v22
  %975 = vmatmul.f32.gmra.mxu0 %v914
  %v976 = vpop.f32.mrf.mxu0
  %v977 = vadd.f32 0.0, %v976
  %978 = vdwg.mxu0
  %979 = vmatpush.msra.mxu0 %v83
  %980 = vmatpush.msra.mxu0 %v79
  %981 = vmatpush.msra.mxu0 %v75
  %982 = vmatpush.msra.mxu0 %v71
  %983 = vmatpush.msra.mxu0 %v67
  %984 = vmatpush.msra.mxu0 %v63
  %985 = vmatpush.msra.mxu0 %v59
  %986 = vmatpush.msra.mxu0 %v55
  %987 = vmatpush.msra.mxu0 %v51
  %988 = vmatpush.msra.mxu0 %v47
  %989 = vmatpush.msra.mxu0 %v43
  %990 = vmatpush.msra.mxu0 %v39
  %991 = vmatpush.msra.mxu0 %v35
  %992 = vmatpush.msra.mxu0 %v31
  %993 = vmatpush.msra.mxu0 %v27
  %994 = vmatpush.msra.mxu0 %v23
  %995 = vmatmul.f32.gmra.mxu0 %v914
  %v996 = vpop.f32.mrf.mxu0
  %v997 = vadd.f32 0.0, %v996
  %998 = vdwg.mxu0
  %v1003 = vrot.slane %v957, 6
  %v1004 = vrot.slane %v977, 4
  %v1005 = vrot.slane %v997, 2
  %v1006 = vsel %vm174, %v937, %v1003
  %v1007 = vsel %vm176, %v1004, %v1005
  %v1008 = vsel %vm178, %v1006, %v1007
  %v1010 = vadd.f32 %v918, %v1008
  %v1011 = vxor.u32 %v1010, 2147483648
  %v1012 = vmul.f32 %v1011, 1.442695
  %v1013 = vpow.pop %v1012
  %v1014 = vadd.f32 %v1013, 1.0
  %v1015 = vrcp.pop %v1014
  %v1016 = vmul.f32 %v1014, %v1015
  %v1017 = vsub.f32 1.0, %v1016
  %v1018 = vmul.f32 %v1015, %v1017
  %v1019 = vadd.f32 %v1015, %v1018
  %vm1020 = vweird.f32 %v1014
  %vm1021 = vweird.f32 %v1015
  %vm1022 = vmor %vm1020, %vm1021
  %v1023 = vsel %vm1022, %v1015, %v1019
  %v1024 = vand.u32 2147483647, %v1014
  %vm1025 = vcmp.eq.f32.partialorder %v1024, 8.507059e+37
  %v1026 = vand.u32 %v1014, 2147483648
  %v1027 = vor.u32 1.1754944e-38, %v1026
  %v1028 = vsel %vm1025, %v1027, %v1023
  %v1029 = vmul.f32 1.0, %v1028
  %v1031 = vrot.slane %v1010, 2
  %v1033 = vxor.u32 %v1031, 2147483648
  %v1034 = vmul.f32 %v1033, 1.442695
  %v1035 = vpow.pop %v1034
  %v1036 = vadd.f32 %v1035, 1.0
  %v1037 = vrcp.pop %v1036
  %v1038 = vmul.f32 %v1036, %v1037
  %v1039 = vsub.f32 1.0, %v1038
  %v1040 = vmul.f32 %v1037, %v1039
  %v1041 = vadd.f32 %v1037, %v1040
  %vm1042 = vweird.f32 %v1036
  %vm1043 = vweird.f32 %v1037
  %vm1044 = vmor %vm1042, %vm1043
  %v1045 = vsel %vm1044, %v1037, %v1041
  %v1046 = vand.u32 2147483647, %v1036
  %vm1047 = vcmp.eq.f32.partialorder %v1046, 8.507059e+37
  %v1048 = vand.u32 %v1036, 2147483648
  %v1049 = vor.u32 1.1754944e-38, %v1048
  %v1050 = vsel %vm1047, %v1049, %v1045
  %v1051 = vmul.f32 1.0, %v1050
  %v1052 = vrot.slane %v1010, 4
  %v1054 = vtanh.pop %v1052
  %v1055 = vrot.slane %v1010, 6
  %v1057 = vxor.u32 %v1055, 2147483648
  %v1058 = vmul.f32 %v1057, 1.442695
  %v1059 = vpow.pop %v1058
  %v1060 = vadd.f32 %v1059, 1.0
  %v1061 = vrcp.pop %v1060
  %v1062 = vmul.f32 %v1060, %v1061
  %v1063 = vsub.f32 1.0, %v1062
  %v1064 = vmul.f32 %v1061, %v1063
  %v1065 = vadd.f32 %v1061, %v1064
  %vm1066 = vweird.f32 %v1060
  %vm1067 = vweird.f32 %v1061
  %vm1068 = vmor %vm1066, %vm1067
  %v1069 = vsel %vm1068, %v1061, %v1065
  %v1070 = vand.u32 2147483647, %v1060
  %vm1071 = vcmp.eq.f32.partialorder %v1070, 8.507059e+37
  %v1072 = vand.u32 %v1060, 2147483648
  %v1073 = vor.u32 1.1754944e-38, %v1072
  %v1074 = vsel %vm1071, %v1073, %v1069
  %v1075 = vmul.f32 1.0, %v1074
  %v1076 = vmul.f32 %v1051, %v912
  %v1077 = vmul.f32 %v1029, %v1054
  %v1078 = vadd.f32 %v1076, %v1077
  %v1079 = vtanh.pop %v1078
  %v1080 = vmul.f32 %v1075, %v1079
  %s1081 = scalar_lea.vmem %s4, 10
  %1082 = vst [vmem:[%s1081] sm:$0x3] %v1080
  %s1083 = scalar_lea.vmem %s0, 48
  %v1084 = vld [vmem:[%s1083] sm:$0xff]
  %1085 = vmatpush.msra.mxu0 %v80
  %1086 = vmatpush.msra.mxu0 %v76
  %1087 = vmatpush.msra.mxu0 %v72
  %1088 = vmatpush.msra.mxu0 %v68
  %1089 = vmatpush.msra.mxu0 %v64
  %1090 = vmatpush.msra.mxu0 %v60
  %1091 = vmatpush.msra.mxu0 %v56
  %1092 = vmatpush.msra.mxu0 %v52
  %1093 = vmatpush.msra.mxu0 %v48
  %1094 = vmatpush.msra.mxu0 %v44
  %1095 = vmatpush.msra.mxu0 %v40
  %1096 = vmatpush.msra.mxu0 %v36
  %1097 = vmatpush.msra.mxu0 %v32
  %1098 = vmatpush.msra.mxu0 %v28
  %1099 = vmatpush.msra.mxu0 %v24
  %1100 = vmatpush.msra.mxu0 %v20
  %1101 = vmatmul.f32.gmra.mxu0 %v1080
  %v1102 = vpop.f32.mrf.mxu0
  %v1103 = vadd.f32 0.0, %v1102
  %1104 = vdwg.mxu0
  %1105 = vmatpush.msra.mxu0 %v81
  %1106 = vmatpush.msra.mxu0 %v77
  %1107 = vmatpush.msra.mxu0 %v73
  %1108 = vmatpush.msra.mxu0 %v69
  %1109 = vmatpush.msra.mxu0 %v65
  %1110 = vmatpush.msra.mxu0 %v61
  %1111 = vmatpush.msra.mxu0 %v57
  %1112 = vmatpush.msra.mxu0 %v53
  %1113 = vmatpush.msra.mxu0 %v49
  %1114 = vmatpush.msra.mxu0 %v45
  %1115 = vmatpush.msra.mxu0 %v41
  %1116 = vmatpush.msra.mxu0 %v37
  %1117 = vmatpush.msra.mxu0 %v33
  %1118 = vmatpush.msra.mxu0 %v29
  %1119 = vmatpush.msra.mxu0 %v25
  %1120 = vmatpush.msra.mxu0 %v21
  %1121 = vmatmul.f32.gmra.mxu0 %v1080
  %v1122 = vpop.f32.mrf.mxu0
  %v1123 = vadd.f32 0.0, %v1122
  %1124 = vdwg.mxu0
  %1125 = vmatpush.msra.mxu0 %v82
  %1126 = vmatpush.msra.mxu0 %v78
  %1127 = vmatpush.msra.mxu0 %v74
  %1128 = vmatpush.msra.mxu0 %v70
  %1129 = vmatpush.msra.mxu0 %v66
  %1130 = vmatpush.msra.mxu0 %v62
  %1131 = vmatpush.msra.mxu0 %v58
  %1132 = vmatpush.msra.mxu0 %v54
  %1133 = vmatpush.msra.mxu0 %v50
  %1134 = vmatpush.msra.mxu0 %v46
  %1135 = vmatpush.msra.mxu0 %v42
  %1136 = vmatpush.msra.mxu0 %v38
  %1137 = vmatpush.msra.mxu0 %v34
  %1138 = vmatpush.msra.mxu0 %v30
  %1139 = vmatpush.msra.mxu0 %v26
  %1140 = vmatpush.msra.mxu0 %v22
  %1141 = vmatmul.f32.gmra.mxu0 %v1080
  %v1142 = vpop.f32.mrf.mxu0
  %v1143 = vadd.f32 0.0, %v1142
  %1144 = vdwg.mxu0
  %1145 = vmatpush.msra.mxu0 %v83
  %1146 = vmatpush.msra.mxu0 %v79
  %1147 = vmatpush.msra.mxu0 %v75
  %1148 = vmatpush.msra.mxu0 %v71
  %1149 = vmatpush.msra.mxu0 %v67
  %1150 = vmatpush.msra.mxu0 %v63
  %1151 = vmatpush.msra.mxu0 %v59
  %1152 = vmatpush.msra.mxu0 %v55
  %1153 = vmatpush.msra.mxu0 %v51
  %1154 = vmatpush.msra.mxu0 %v47
  %1155 = vmatpush.msra.mxu0 %v43
  %1156 = vmatpush.msra.mxu0 %v39
  %1157 = vmatpush.msra.mxu0 %v35
  %1158 = vmatpush.msra.mxu0 %v31
  %1159 = vmatpush.msra.mxu0 %v27
  %1160 = vmatpush.msra.mxu0 %v23
  %1161 = vmatmul.f32.gmra.mxu0 %v1080
  %v1162 = vpop.f32.mrf.mxu0
  %v1163 = vadd.f32 0.0, %v1162
  %1164 = vdwg.mxu0
  %v1169 = vrot.slane %v1123, 6
  %v1170 = vrot.slane %v1143, 4
  %v1171 = vrot.slane %v1163, 2
  %v1172 = vsel %vm174, %v1103, %v1169
  %v1173 = vsel %vm176, %v1170, %v1171
  %v1174 = vsel %vm178, %v1172, %v1173
  %v1176 = vadd.f32 %v1084, %v1174
  %v1177 = vxor.u32 %v1176, 2147483648
  %v1178 = vmul.f32 %v1177, 1.442695
  %v1179 = vpow.pop %v1178
  %v1180 = vadd.f32 %v1179, 1.0
  %v1181 = vrcp.pop %v1180
  %v1182 = vmul.f32 %v1180, %v1181
  %v1183 = vsub.f32 1.0, %v1182
  %v1184 = vmul.f32 %v1181, %v1183
  %v1185 = vadd.f32 %v1181, %v1184
  %vm1186 = vweird.f32 %v1180
  %vm1187 = vweird.f32 %v1181
  %vm1188 = vmor %vm1186, %vm1187
  %v1189 = vsel %vm1188, %v1181, %v1185
  %v1190 = vand.u32 2147483647, %v1180
  %vm1191 = vcmp.eq.f32.partialorder %v1190, 8.507059e+37
  %v1192 = vand.u32 %v1180, 2147483648
  %v1193 = vor.u32 1.1754944e-38, %v1192
  %v1194 = vsel %vm1191, %v1193, %v1189
  %v1195 = vmul.f32 1.0, %v1194
  %v1197 = vrot.slane %v1176, 2
  %v1199 = vxor.u32 %v1197, 2147483648
  %v1200 = vmul.f32 %v1199, 1.442695
  %v1201 = vpow.pop %v1200
  %v1202 = vadd.f32 %v1201, 1.0
  %v1203 = vrcp.pop %v1202
  %v1204 = vmul.f32 %v1202, %v1203
  %v1205 = vsub.f32 1.0, %v1204
  %v1206 = vmul.f32 %v1203, %v1205
  %v1207 = vadd.f32 %v1203, %v1206
  %vm1208 = vweird.f32 %v1202
  %vm1209 = vweird.f32 %v1203
  %vm1210 = vmor %vm1208, %vm1209
  %v1211 = vsel %vm1210, %v1203, %v1207
  %v1212 = vand.u32 2147483647, %v1202
  %vm1213 = vcmp.eq.f32.partialorder %v1212, 8.507059e+37
  %v1214 = vand.u32 %v1202, 2147483648
  %v1215 = vor.u32 1.1754944e-38, %v1214
  %v1216 = vsel %vm1213, %v1215, %v1211
  %v1217 = vmul.f32 1.0, %v1216
  %v1218 = vrot.slane %v1176, 4
  %v1220 = vtanh.pop %v1218
  %v1221 = vrot.slane %v1176, 6
  %v1223 = vxor.u32 %v1221, 2147483648
  %v1224 = vmul.f32 %v1223, 1.442695
  %v1225 = vpow.pop %v1224
  %v1226 = vadd.f32 %v1225, 1.0
  %v1227 = vrcp.pop %v1226
  %v1228 = vmul.f32 %v1226, %v1227
  %v1229 = vsub.f32 1.0, %v1228
  %v1230 = vmul.f32 %v1227, %v1229
  %v1231 = vadd.f32 %v1227, %v1230
  %vm1232 = vweird.f32 %v1226
  %vm1233 = vweird.f32 %v1227
  %vm1234 = vmor %vm1232, %vm1233
  %v1235 = vsel %vm1234, %v1227, %v1231
  %v1236 = vand.u32 2147483647, %v1226
  %vm1237 = vcmp.eq.f32.partialorder %v1236, 8.507059e+37
  %v1238 = vand.u32 %v1226, 2147483648
  %v1239 = vor.u32 1.1754944e-38, %v1238
  %v1240 = vsel %vm1237, %v1239, %v1235
  %v1241 = vmul.f32 1.0, %v1240
  %v1242 = vmul.f32 %v1217, %v1078
  %v1243 = vmul.f32 %v1195, %v1220
  %v1244 = vadd.f32 %v1242, %v1243
  %v1245 = vtanh.pop %v1244
  %v1246 = vmul.f32 %v1241, %v1245
  %s1247 = scalar_lea.vmem %s4, 12
  %1248 = vst [vmem:[%s1247] sm:$0x3] %v1246
  %s1249 = scalar_lea.vmem %s0, 56
  %v1250 = vld [vmem:[%s1249] sm:$0xff]
  %1251 = vmatpush.msra.mxu0 %v80
  %1252 = vmatpush.msra.mxu0 %v76
  %1253 = vmatpush.msra.mxu0 %v72
  %1254 = vmatpush.msra.mxu0 %v68
  %1255 = vmatpush.msra.mxu0 %v64
  %1256 = vmatpush.msra.mxu0 %v60
  %1257 = vmatpush.msra.mxu0 %v56
  %1258 = vmatpush.msra.mxu0 %v52
  %1259 = vmatpush.msra.mxu0 %v48
  %1260 = vmatpush.msra.mxu0 %v44
  %1261 = vmatpush.msra.mxu0 %v40
  %1262 = vmatpush.msra.mxu0 %v36
  %1263 = vmatpush.msra.mxu0 %v32
  %1264 = vmatpush.msra.mxu0 %v28
  %1265 = vmatpush.msra.mxu0 %v24
  %1266 = vmatpush.msra.mxu0 %v20
  %1267 = vmatmul.f32.gmra.mxu0 %v1246
  %v1268 = vpop.f32.mrf.mxu0
  %v1269 = vadd.f32 0.0, %v1268
  %1270 = vdwg.mxu0
  %1271 = vmatpush.msra.mxu0 %v81
  %1272 = vmatpush.msra.mxu0 %v77
  %1273 = vmatpush.msra.mxu0 %v73
  %1274 = vmatpush.msra.mxu0 %v69
  %1275 = vmatpush.msra.mxu0 %v65
  %1276 = vmatpush.msra.mxu0 %v61
  %1277 = vmatpush.msra.mxu0 %v57
  %1278 = vmatpush.msra.mxu0 %v53
  %1279 = vmatpush.msra.mxu0 %v49
  %1280 = vmatpush.msra.mxu0 %v45
  %1281 = vmatpush.msra.mxu0 %v41
  %1282 = vmatpush.msra.mxu0 %v37
  %1283 = vmatpush.msra.mxu0 %v33
  %1284 = vmatpush.msra.mxu0 %v29
  %1285 = vmatpush.msra.mxu0 %v25
  %1286 = vmatpush.msra.mxu0 %v21
  %1287 = vmatmul.f32.gmra.mxu0 %v1246
  %v1288 = vpop.f32.mrf.mxu0
  %v1289 = vadd.f32 0.0, %v1288
  %1290 = vdwg.mxu0
  %1291 = vmatpush.msra.mxu0 %v82
  %1292 = vmatpush.msra.mxu0 %v78
  %1293 = vmatpush.msra.mxu0 %v74
  %1294 = vmatpush.msra.mxu0 %v70
  %1295 = vmatpush.msra.mxu0 %v66
  %1296 = vmatpush.msra.mxu0 %v62
  %1297 = vmatpush.msra.mxu0 %v58
  %1298 = vmatpush.msra.mxu0 %v54
  %1299 = vmatpush.msra.mxu0 %v50
  %1300 = vmatpush.msra.mxu0 %v46
  %1301 = vmatpush.msra.mxu0 %v42
  %1302 = vmatpush.msra.mxu0 %v38
  %1303 = vmatpush.msra.mxu0 %v34
  %1304 = vmatpush.msra.mxu0 %v30
  %1305 = vmatpush.msra.mxu0 %v26
  %1306 = vmatpush.msra.mxu0 %v22
  %1307 = vmatmul.f32.gmra.mxu0 %v1246
  %v1308 = vpop.f32.mrf.mxu0
  %v1309 = vadd.f32 0.0, %v1308
  %1310 = vdwg.mxu0
  %1311 = vmatpush.msra.mxu0 %v83
  %1312 = vmatpush.msra.mxu0 %v79
  %1313 = vmatpush.msra.mxu0 %v75
  %1314 = vmatpush.msra.mxu0 %v71
  %1315 = vmatpush.msra.mxu0 %v67
  %1316 = vmatpush.msra.mxu0 %v63
  %1317 = vmatpush.msra.mxu0 %v59
  %1318 = vmatpush.msra.mxu0 %v55
  %1319 = vmatpush.msra.mxu0 %v51
  %1320 = vmatpush.msra.mxu0 %v47
  %1321 = vmatpush.msra.mxu0 %v43
  %1322 = vmatpush.msra.mxu0 %v39
  %1323 = vmatpush.msra.mxu0 %v35
  %1324 = vmatpush.msra.mxu0 %v31
  %1325 = vmatpush.msra.mxu0 %v27
  %1326 = vmatpush.msra.mxu0 %v23
  %1327 = vmatmul.f32.gmra.mxu0 %v1246
  %v1328 = vpop.f32.mrf.mxu0
  %v1329 = vadd.f32 0.0, %v1328
  %1330 = vdwg.mxu0
  %v1335 = vrot.slane %v1289, 6
  %v1336 = vrot.slane %v1309, 4
  %v1337 = vrot.slane %v1329, 2
  %v1338 = vsel %vm174, %v1269, %v1335
  %v1339 = vsel %vm176, %v1336, %v1337
  %v1340 = vsel %vm178, %v1338, %v1339
  %v1342 = vadd.f32 %v1250, %v1340
  %v1343 = vxor.u32 %v1342, 2147483648
  %v1344 = vmul.f32 %v1343, 1.442695
  %v1345 = vpow.pop %v1344
  %v1346 = vadd.f32 %v1345, 1.0
  %v1347 = vrcp.pop %v1346
  %v1348 = vmul.f32 %v1346, %v1347
  %v1349 = vsub.f32 1.0, %v1348
  %v1350 = vmul.f32 %v1347, %v1349
  %v1351 = vadd.f32 %v1347, %v1350
  %vm1352 = vweird.f32 %v1346
  %vm1353 = vweird.f32 %v1347
  %vm1354 = vmor %vm1352, %vm1353
  %v1355 = vsel %vm1354, %v1347, %v1351
  %v1356 = vand.u32 2147483647, %v1346
  %vm1357 = vcmp.eq.f32.partialorder %v1356, 8.507059e+37
  %v1358 = vand.u32 %v1346, 2147483648
  %v1359 = vor.u32 1.1754944e-38, %v1358
  %v1360 = vsel %vm1357, %v1359, %v1355
  %v1361 = vmul.f32 1.0, %v1360
  %v1363 = vrot.slane %v1342, 2
  %v1365 = vxor.u32 %v1363, 2147483648
  %v1366 = vmul.f32 %v1365, 1.442695
  %v1367 = vpow.pop %v1366
  %v1368 = vadd.f32 %v1367, 1.0
  %v1369 = vrcp.pop %v1368
  %v1370 = vmul.f32 %v1368, %v1369
  %v1371 = vsub.f32 1.0, %v1370
  %v1372 = vmul.f32 %v1369, %v1371
  %v1373 = vadd.f32 %v1369, %v1372
  %vm1374 = vweird.f32 %v1368
  %vm1375 = vweird.f32 %v1369
  %vm1376 = vmor %vm1374, %vm1375
  %v1377 = vsel %vm1376, %v1369, %v1373
  %v1378 = vand.u32 2147483647, %v1368
  %vm1379 = vcmp.eq.f32.partialorder %v1378, 8.507059e+37
  %v1380 = vand.u32 %v1368, 2147483648
  %v1381 = vor.u32 1.1754944e-38, %v1380
  %v1382 = vsel %vm1379, %v1381, %v1377
  %v1383 = vmul.f32 1.0, %v1382
  %v1384 = vrot.slane %v1342, 4
  %v1386 = vtanh.pop %v1384
  %v1387 = vrot.slane %v1342, 6
  %v1389 = vxor.u32 %v1387, 2147483648
  %v1390 = vmul.f32 %v1389, 1.442695
  %v1391 = vpow.pop %v1390
  %v1392 = vadd.f32 %v1391, 1.0
  %v1393 = vrcp.pop %v1392
  %v1394 = vmul.f32 %v1392, %v1393
  %v1395 = vsub.f32 1.0, %v1394
  %v1396 = vmul.f32 %v1393, %v1395
  %v1397 = vadd.f32 %v1393, %v1396
  %vm1398 = vweird.f32 %v1392
  %vm1399 = vweird.f32 %v1393
  %vm1400 = vmor %vm1398, %vm1399
  %v1401 = vsel %vm1400, %v1393, %v1397
  %v1402 = vand.u32 2147483647, %v1392
  %vm1403 = vcmp.eq.f32.partialorder %v1402, 8.507059e+37
  %v1404 = vand.u32 %v1392, 2147483648
  %v1405 = vor.u32 1.1754944e-38, %v1404
  %v1406 = vsel %vm1403, %v1405, %v1401
  %v1407 = vmul.f32 1.0, %v1406
  %v1408 = vmul.f32 %v1383, %v1244
  %v1409 = vmul.f32 %v1361, %v1386
  %v1410 = vadd.f32 %v1408, %v1409
  %v1411 = vtanh.pop %v1410
  %v1412 = vmul.f32 %v1407, %v1411
  %s1413 = scalar_lea.vmem %s4, 14
  %1414 = vst [vmem:[%s1413] sm:$0x3] %v1412
  %1415 = vst [vmem:[%s5] sm:$0x3] %v1412
  %1416 = vst [vmem:[%s6] sm:$0x3] %v1410
  // Predicated region
  $region18: #{basic_attention_decoder_forward.3} parent=0 // pred_check
    _
  $region19: #{basic_attention_decoder_forward.3} parent=0 // pred_check_branch
    %1418 = sbr.rel (0) target = $region21
  $region20: #{basic_attention_decoder_forward.3} parent=0 // pred_region
    _
  $region21: #{basic_attention_decoder_forward.3} parent=0 // pred_fallthru
    _
  // Predicated region
  $region22: #{basic_attention_decoder_forward.3} parent=0 // pred_check
    _
  $region23: #{basic_attention_decoder_forward.3} parent=0 // pred_check_branch
    %1420 = sbr.rel (0) target = $region25
  $region24: #{basic_attention_decoder_forward.3} parent=0 // pred_region
    _
  $region25: #{basic_attention_decoder_forward.3} parent=0 // pred_fallthru
    _
  // Predicated region
  $region26: #{basic_attention_decoder_forward.3} parent=0 // pred_check
    _
  $region27: #{basic_attention_decoder_forward.3} parent=0 // pred_check_branch
    %1422 = sbr.rel (0) target = $region29
  $region28: #{basic_attention_decoder_forward.3} parent=0 // pred_region
    _
  $region29: #{basic_attention_decoder_forward.3} parent=0 // pred_fallthru
    _
  // Predicated region
  $region30: #{basic_attention_decoder_forward.3} parent=0 // pred_check
    _
  $region31: #{basic_attention_decoder_forward.3} parent=0 // pred_check_branch
    %1424 = sbr.rel (0) target = $region33
  $region32: #{basic_attention_decoder_forward.3} parent=0 // pred_region
    _
  $region33: #{basic_attention_decoder_forward.3} parent=0 // pred_fallthru
    _
  // Predicated region
  $region34: #{basic_attention_decoder_forward.3} parent=0 // pred_check
    _
  $region35: #{basic_attention_decoder_forward.3} parent=0 // pred_check_branch
    %1426 = sbr.rel (0) target = $region37
  $region36: #{basic_attention_decoder_forward.3} parent=0 // pred_region
    _
  $region37: #{basic_attention_decoder_forward.3} parent=0 // pred_fallthru
    _
  // Predicated region
  $region38: #{basic_attention_decoder_forward.3} parent=0 // pred_check
    _
  $region39: #{basic_attention_decoder_forward.3} parent=0 // pred_check_branch
    %1428 = sbr.rel (0) target = $region41
  $region40: #{basic_attention_decoder_forward.3} parent=0 // pred_region
    _
  $region41: #{basic_attention_decoder_forward.3} parent=0 // pred_fallthru
    _

</llo_original>
